<compile_context>
chip_gen: v7x
topology: tpu7x:2x2x1
jax: 0.10.0
libtpu: 0.0.40
codegen_flags: <defaults>
</compile_context>

<pallas_src>
import functools

import jax
import jax.numpy as jnp
import numpy as np
from jax.experimental import pallas as pl
from jax.experimental.pallas import tpu as pltpu


def _round_up(v, m):
    return (v + m - 1) // m * m


def _chunking(t, max_chunk):
    """(chunk_len, num_chunks) with num_chunks*chunk_len >= t, waste < num_chunks."""
    nt = -(-t // max_chunk)          # ceil(t / max_chunk)
    tc = -(-t // nt)                 # ceil(t / nt)  -> minimal padding
    return tc, nt


def _lstm_kernel(x_ref, wih_ref, whh_ref, b_ref, wfc_ref, bfc_ref,
                 out_ref, h_ref, c_ref, xproj_ref,
                 *, hp, tc, bblk, t_real, nt):
    """One grid step = Tc timesteps of the recurrence for one batch block."""
    s = pl.program_id(1)             # time-chunk index (serial, "arbitrary")

    @pl.when(s == 0)
    def _():
        h_ref[...] = jnp.zeros_like(h_ref)
        c_ref[...] = jnp.zeros_like(c_ref)

    # ---- Off-chain work: whole-chunk input projection ----------------------
    # One MXU matmul for the chunk; parked in VMEM scratch so per-step slices
    # are streamed instead of pinned in vregs across the unrolled recurrence.
    xproj_ref[...] = (jnp.dot(x_ref[...], wih_ref[...],
                              preferred_element_type=jnp.float32)
                      + b_ref[...])                       # (Tc*BBLK, 4Hp) f32

    # ---- Serial recurrence over the chunk (statically unrolled) ------------
    h = h_ref[...]                                        # (BBLK, Hp) f32
    c = c_ref[...]

    # Only the last chunk can contain padded timesteps; steps i < valid_in_last
    # are valid in every chunk (static), the rest are gated by "not last chunk".
    valid_in_last = t_real - (nt - 1) * tc
    if valid_in_last < tc:
        keep_tail = jnp.minimum(nt - 1 - s, 1).astype(jnp.float32)

    for i in range(tc):
        # h @ W_hh^T is the only matmul left on the h-dependency chain.  W_hh
        # is re-read from its VMEM ref at the dot site (not hoisted as SSA).
        # TODO(synk): on v5e, hold W_hh gate slabs stationary in MXU weight
        # registers across the chunk (pltpu.matmul_push_rhs / matmul_acc_lhs /
        # matmul_pop) instead of re-pushing them every timestep.
        gates = xproj_ref[i * bblk:(i + 1) * bblk, :] + jnp.dot(
            h.astype(whh_ref.dtype), whh_ref[...],
            preferred_element_type=jnp.float32)           # (BBLK, 4Hp) f32
        # One wide tanh for all four gate slabs; the i/f/o slabs were
        # pre-scaled by 0.5 in the wrapper so sigmoid(z) = 0.5*(1+tanh(z/2)).
        t_all = jnp.tanh(gates)
        i_g = 0.5 + 0.5 * t_all[:, 0 * hp:1 * hp]
        f_g = 0.5 + 0.5 * t_all[:, 1 * hp:2 * hp]
        g_g = t_all[:, 2 * hp:3 * hp]
        o_g = 0.5 + 0.5 * t_all[:, 3 * hp:4 * hp]
        c_new = f_g * c + i_g * g_g
        h_new = o_g * jnp.tanh(c_new)
        if i < valid_in_last:        # statically always-valid timesteps
            h, c = h_new, c_new
        else:                        # possible T-padding tail step: mask carry
            h = h + keep_tail * (h_new - h)
            c = c + keep_tail * (c_new - c)

    h_ref[...] = h
    c_ref[...] = c

    # ---- Fused fc on the final hidden state (one lane-dense write) ---------
    @pl.when(s == nt - 1)
    def _():
        out_ref[...] = (jnp.dot(h.astype(wfc_ref.dtype), wfc_ref[...],
                                preferred_element_type=jnp.float32)
                        + bfc_ref[...]).astype(out_ref.dtype)


def lstm_model_forward(x, params, *, max_chunk=32):
    """x: (B, T, D) float32 -> (B, output_size) float32 (PyTorch LSTMModel)."""
    B, T, D = x.shape
    w_ih, w_hh, b_ih, b_hh, w_fc, b_fc = (
        params["w_ih"], params["w_hh"], params["b_ih"], params["b_hh"],
        params["w_fc"], params["b_fc"])
    H = w_hh.shape[1]
    O = w_fc.shape[0]

    # Padded / blocked sizes: lanes (128) for hidden & output dims, sublanes
    # (8) for batch.  B > 8 -> two batch blocks so the leading "parallel" grid
    # axis can be sharded across v7x's two TensorCores (harmless on v5e/v6e).
    Hp = _round_up(H, 128)
    Op = _round_up(O, 128)
    nb = 2 if B > 8 else 1
    Bp = _round_up(B, 8 * nb)
    BBLK = Bp // nb
    Tc, nt = _chunking(T, max_chunk)       # T padded to nt*Tc, tail masked
    Tp = Tc * nt

    f32, bf16 = jnp.float32, jnp.bfloat16

    # --- Weight relayout (once).  PyTorch gate order [i, f, g, o]; each gate
    # owns a lane-aligned slab of width Hp.  The i/f/o slabs are pre-scaled by
    # 0.5 (exact power of two) so the kernel uses one wide tanh per step.
    gate_scale = jnp.array([0.5, 0.5, 1.0, 0.5], f32)[None, :, None]
    wih_p = (jnp.zeros((D, 4, Hp), f32).at[:, :, :H].set(
        w_ih.T.reshape(D, 4, H)) * gate_scale).reshape(D, 4 * Hp).astype(bf16)
    whh_p = (jnp.zeros((Hp, 4, Hp), f32).at[:H, :, :H].set(
        w_hh.T.reshape(H, 4, H)) * gate_scale).reshape(Hp, 4 * Hp).astype(bf16)
    b_p = (jnp.zeros((4, Hp), f32).at[:, :H].set(
        (b_ih + b_hh).reshape(4, H)) * gate_scale[0]).reshape(1, 4 * Hp)
    wfc_p = jnp.zeros((Hp, Op), f32).at[:H, :O].set(w_fc.T).astype(bf16)
    bfc_p = jnp.zeros((1, Op), f32).at[0, :O].set(b_fc)

    # x: pad batch/time, then lay each batch block out time-major so one grid
    # step's tile is a contiguous (Tc*BBLK, D) row slab (per-step gate slices
    # are then contiguous, lane-aligned views of the VMEM scratch).
    # TODO(synk): for very long sequences, keep x batch-major in HBM and do
    # this relayout per-tile in VMEM (XLU) to avoid the extra HBM pass.
    x_p = jnp.zeros((Bp, Tp, D), f32).at[:B, :T].set(x)
    x_tm = (x_p.reshape(nb, BBLK, Tp, D).transpose(0, 2, 1, 3)
                .reshape(nb, Tp * BBLK, D).astype(bf16))

    # Explicit scoped-VMEM budget (defaults: 16 MiB v5e / 32 MiB v6e,v7x).
    # Pipeline operands are double-buffered even with constant index_maps.
    # TODO(synk): for large H, single-buffer the constant weight specs
    # (pipeline_mode=pl.Buffered(1)) or stream W_hh slabs with
    # pltpu.emit_pipeline, and hoist the input projection to a plain XLA
    # matmul (v7x: 64 MiB VMEM / 3.2 TB/s HBM favours streaming).
    weight_bytes = (D * 4 * Hp + Hp * 4 * Hp + Hp * Op) * 2            # bf16
    bias_bytes = (4 * Hp + Op) * 4                                     # f32
    x_blk_bytes = Tc * BBLK * _round_up(D, 128) * 2                    # bf16
    out_bytes = BBLK * Op * 4
    scratch_bytes = (2 * BBLK * Hp + Tc * BBLK * 4 * Hp) * 4
    footprint = 2 * (weight_bytes + bias_bytes + x_blk_bytes + out_bytes)
    footprint += scratch_bytes
    vmem_limit = int(min(100 * 2**20, 2 * footprint + (4 << 20)))

    kernel = functools.partial(_lstm_kernel, hp=Hp, tc=Tc, bblk=BBLK,
                               t_real=T, nt=nt)

    out_p = pl.pallas_call(
        kernel,
        out_shape=jax.ShapeDtypeStruct((Bp, Op), f32),
        grid_spec=pltpu.PrefetchScalarGridSpec(
            num_scalar_prefetch=0,
            grid=(nb, nt),                       # (batch blocks, time chunks)
            in_specs=[
                pl.BlockSpec((None, Tc * BBLK, D),
                             lambda bi, s: (bi, s, 0)),               # x chunk
                pl.BlockSpec((D, 4 * Hp), lambda bi, s: (0, 0)),      # W_ih^T
                pl.BlockSpec((Hp, 4 * Hp), lambda bi, s: (0, 0)),     # W_hh^T
                pl.BlockSpec((1, 4 * Hp), lambda bi, s: (0, 0)),      # bias
                pl.BlockSpec((Hp, Op), lambda bi, s: (0, 0)),         # W_fc^T
                pl.BlockSpec((1, Op), lambda bi, s: (0, 0)),          # b_fc
            ],
            out_specs=pl.BlockSpec((BBLK, Op), lambda bi, s: (bi, 0)),
            scratch_shapes=[
                pltpu.VMEM((BBLK, Hp), f32),             # h state (resident)
                pltpu.VMEM((BBLK, Hp), f32),             # c state (resident)
                pltpu.VMEM((Tc * BBLK, 4 * Hp), f32),    # per-chunk x @ W_ih^T
            ],
        ),
        compiler_params=pltpu.CompilerParams(
            dimension_semantics=("parallel", "arbitrary"),
            vmem_limit_bytes=vmem_limit),
    )(x_tm, wih_p, whh_p, b_p, wfc_p, bfc_p)

    return out_p[:B, :O]


def _reference_forward(x, params):
    """Pure-JAX float32 reference of the PyTorch LSTMModel forward."""
    w_ih, w_hh, b_ih, b_hh, w_fc, b_fc = (
        params["w_ih"], params["w_hh"], params["b_ih"], params["b_hh"],
        params["w_fc"], params["b_fc"])
    B, T, D = x.shape
    H = w_hh.shape[1]

    def step(carry, x_t):
        h, c = carry
        gates = x_t @ w_ih.T + b_ih + h @ w_hh.T + b_hh
        i = jax.nn.sigmoid(gates[:, 0 * H:1 * H])
        f = jax.nn.sigmoid(gates[:, 1 * H:2 * H])
        g = jnp.tanh(gates[:, 2 * H:3 * H])
        o = jax.nn.sigmoid(gates[:, 3 * H:4 * H])
        c = f * c + i * g
        h = o * jnp.tanh(c)
        return (h, c), h

    init = (jnp.zeros((B, H), jnp.float32), jnp.zeros((B, H), jnp.float32))
    (_, _), hs = jax.lax.scan(step, init, jnp.transpose(x, (1, 0, 2)))
    return hs[-1] @ w_fc.T + b_fc


def init_params(key, input_size, hidden_size, output_size):
    """Deterministic PyTorch-style uniform(-1/sqrt(H), 1/sqrt(H)) init."""
    k = 1.0 / np.sqrt(hidden_size)
    keys = jax.random.split(key, 6)
    u = lambda kk, shape: jax.random.uniform(kk, shape, jnp.float32, -k, k)
    return {
        "w_ih": u(keys[0], (4 * hidden_size, input_size)),
        "w_hh": u(keys[1], (4 * hidden_size, hidden_size)),
        "b_ih": u(keys[2], (4 * hidden_size,)),
        "b_hh": u(keys[3], (4 * hidden_size,)),
        "w_fc": u(keys[4], (output_size, hidden_size)),
        "b_fc": u(keys[5], (output_size,)),
    }


if __name__ == "__main__":
    keys = jax.random.split(jax.random.PRNGKey(0), 4)

    # Primary toy config consistent with the module: B=2, T=8, D=16, H=32, O=8.
    B, T, D, H, O = 2, 8, 16, 32, 8
    x = jax.random.normal(keys[0], (B, T, D), dtype=jnp.float32)
    params = init_params(keys[1], D, H, O)
    out = jax.block_until_ready(lstm_model_forward(x, params))
    ref = jax.block_until_ready(_reference_forward(x, params))
    assert out.shape == (B, O)
    # bf16 matmul operands (f32 accumulation) -> loosened tolerance vs f32 ref.
    np.testing.assert_allclose(np.asarray(out), np.asarray(ref),
                               rtol=5e-2, atol=5e-2)

    # Secondary config exercising the T-padding tail mask (T=11 with Tc=4) and
    # the batch-block "parallel" grid axis (B=10 -> 2 blocks of 8).
    B2, T2 = 10, 11
    x2 = jax.random.normal(keys[2], (B2, T2, D), dtype=jnp.float32)
    params2 = init_params(keys[3], D, H, O)
    out2 = jax.block_until_ready(lstm_model_forward(x2, params2, max_chunk=4))
    ref2 = jax.block_until_ready(_reference_forward(x2, params2))
    np.testing.assert_allclose(np.asarray(out2), np.asarray(ref2),
                               rtol=5e-2, atol=5e-2)

    print("KERNEL_OK")
</pallas_src>

<mosaic_0001>
module attributes {stable_mosaic.version = 11 : i64} {
  func.func @_lstm_kernel(%arg0: i32, %arg1: i32, %arg2: memref<1x64x16xbf16, #tpu.memory_space<vmem>>, %arg3: memref<16x512xbf16, #tpu.memory_space<vmem>>, %arg4: memref<128x512xbf16, #tpu.memory_space<vmem>>, %arg5: memref<1x512xf32, #tpu.memory_space<vmem>>, %arg6: memref<128x128xbf16, #tpu.memory_space<vmem>>, %arg7: memref<1x128xf32, #tpu.memory_space<vmem>>, %arg8: memref<8x128xf32, #tpu.memory_space<vmem>>, %arg9: memref<8x128xf32, #tpu.memory_space<vmem>>, %arg10: memref<8x128xf32, #tpu.memory_space<vmem>>, %arg11: memref<64x512xf32, #tpu.memory_space<vmem>>) attributes {dimension_semantics = [#tpu.dimension_semantics<parallel>, #tpu.dimension_semantics<arbitrary>], iteration_bounds = array<i64: 1, 1>, scalar_prefetch = 0 : i64, scratch_operands = 3 : i64, tpu.core_type = #tpu.core_type<tc>, window_params = [{transform_indices = @transform_0, window_bounds = array<i64: 1, 64, 16>}, {pipeline_mode = #tpu.pipeline_mode<synchronous>, transform_indices = @transform_1, window_bounds = array<i64: 16, 512>}, {pipeline_mode = #tpu.pipeline_mode<synchronous>, transform_indices = @transform_2, window_bounds = array<i64: 128, 512>}, {pipeline_mode = #tpu.pipeline_mode<synchronous>, transform_indices = @transform_3, window_bounds = array<i64: 1, 512>}, {pipeline_mode = #tpu.pipeline_mode<synchronous>, transform_indices = @transform_4, window_bounds = array<i64: 128, 128>}, {pipeline_mode = #tpu.pipeline_mode<synchronous>, transform_indices = @transform_5, window_bounds = array<i64: 1, 128>}, {transform_indices = @transform_6, window_bounds = array<i64: 8, 128>}]} {
    %c0_i32 = arith.constant 0 : i32
    %0 = arith.cmpi eq, %arg1, %c0_i32 : i32
    %1 = arith.extui %0 : i1 to i32
    %c0_i32_0 = arith.constant 0 : i32
    %2 = arith.cmpi ne, %1, %c0_i32_0 : i32
    scf.if %2 {
      %cst_100 = arith.constant 0.000000e+00 : f32
      %234 = vector.broadcast %cst_100 : f32 to vector<8x128xf32>
      %c0_101 = arith.constant 0 : index
      %c0_102 = arith.constant 0 : index
      %235 = vector.load %arg9[%c0_101, %c0_102] : memref<8x128xf32, #tpu.memory_space<vmem>>, vector<8x128xf32>
      tpu.vector_store %arg9[%c0_101, %c0_102], %234 {strides = array<i32>} : memref<8x128xf32, #tpu.memory_space<vmem>>, vector<8x128xf32>,
      %cst_103 = arith.constant 0.000000e+00 : f32
      %236 = vector.broadcast %cst_103 : f32 to vector<8x128xf32>
      %c0_104 = arith.constant 0 : index
      %c0_105 = arith.constant 0 : index
      %237 = vector.load %arg10[%c0_104, %c0_105] : memref<8x128xf32, #tpu.memory_space<vmem>>, vector<8x128xf32>
      tpu.vector_store %arg10[%c0_104, %c0_105], %236 {strides = array<i32>} : memref<8x128xf32, #tpu.memory_space<vmem>>, vector<8x128xf32>,
    } else {
    }
    %c0 = arith.constant 0 : index
    %c0_1 = arith.constant 0 : index
    %c0_2 = arith.constant 0 : index
    %3 = vector.load %arg2[%c0, %c0_1, %c0_2] : memref<1x64x16xbf16, #tpu.memory_space<vmem>>, vector<1x64x16xbf16>
    %4 = vector.shape_cast %3 : vector<1x64x16xbf16> to vector<64x16xbf16>
    %c0_3 = arith.constant 0 : index
    %c0_4 = arith.constant 0 : index
    %5 = vector.load %arg3[%c0_3, %c0_4] : memref<16x512xbf16, #tpu.memory_space<vmem>>, vector<16x512xbf16>
    %cst = arith.constant dense<0.000000e+00> : vector<64x512xf32>
    %6 = tpu.matmul %4, %5, %cst {dimension_numbers = #tpu.dot_dimension_numbers<[1], [0], [0], [1], [0, 0, 1, 1], [], []>} : vector<64x16xbf16>, vector<16x512xbf16>, vector<64x512xf32> -> vector<64x512xf32>
    %c0_5 = arith.constant 0 : index
    %c0_6 = arith.constant 0 : index
    %7 = vector.load %arg5[%c0_5, %c0_6] : memref<1x512xf32, #tpu.memory_space<vmem>>, vector<1x512xf32>
    %8 = vector.broadcast %7 : vector<1x512xf32> to vector<64x512xf32>
    %9 = arith.addf %6, %8 : vector<64x512xf32>
    %c0_7 = arith.constant 0 : index
    %c0_8 = arith.constant 0 : index
    %10 = vector.load %arg11[%c0_7, %c0_8] : memref<64x512xf32, #tpu.memory_space<vmem>>, vector<64x512xf32>
    tpu.vector_store %arg11[%c0_7, %c0_8], %9 {strides = array<i32>} : memref<64x512xf32, #tpu.memory_space<vmem>>, vector<64x512xf32>,
    %c0_9 = arith.constant 0 : index
    %c0_10 = arith.constant 0 : index
    %11 = vector.load %arg9[%c0_9, %c0_10] : memref<8x128xf32, #tpu.memory_space<vmem>>, vector<8x128xf32>
    %c0_11 = arith.constant 0 : index
    %c0_12 = arith.constant 0 : index
    %12 = vector.load %arg10[%c0_11, %c0_12] : memref<8x128xf32, #tpu.memory_space<vmem>>, vector<8x128xf32>
    %c0_13 = arith.constant 0 : index
    %c0_14 = arith.constant 0 : index
    %13 = vector.load %arg11[%c0_13, %c0_14] : memref<64x512xf32, #tpu.memory_space<vmem>>, vector<8x512xf32>
    %14 = arith.truncf %11 : vector<8x128xf32> to vector<8x128xbf16>
    %c0_15 = arith.constant 0 : index
    %c0_16 = arith.constant 0 : index
    %15 = vector.load %arg4[%c0_15, %c0_16] : memref<128x512xbf16, #tpu.memory_space<vmem>>, vector<128x512xbf16>
    %cst_17 = arith.constant dense<0.000000e+00> : vector<8x512xf32>
    %16 = tpu.matmul %14, %15, %cst_17 {dimension_numbers = #tpu.dot_dimension_numbers<[1], [0], [0], [1], [0, 0, 1, 1], [], []>} : vector<8x128xbf16>, vector<128x512xbf16>, vector<8x512xf32> -> vector<8x512xf32>
    %17 = arith.addf %13, %16 : vector<8x512xf32>
    %18 = math.tanh %17 : vector<8x512xf32>
    %19 = vector.extract_strided_slice %18 {offsets = [0, 0], sizes = [8, 128], strides = [1, 1]} : vector<8x512xf32> to vector<8x128xf32>
    %cst_18 = arith.constant 5.000000e-01 : f32
    %20 = vector.broadcast %cst_18 : f32 to vector<8x128xf32>
    %21 = arith.mulf %20, %19 : vector<8x128xf32>
    %cst_19 = arith.constant 5.000000e-01 : f32
    %22 = vector.broadcast %cst_19 : f32 to vector<8x128xf32>
    %23 = arith.addf %22, %21 : vector<8x128xf32>
    %24 = vector.extract_strided_slice %18 {offsets = [0, 128], sizes = [8, 128], strides = [1, 1]} : vector<8x512xf32> to vector<8x128xf32>
    %cst_20 = arith.constant 5.000000e-01 : f32
    %25 = vector.broadcast %cst_20 : f32 to vector<8x128xf32>
    %26 = arith.mulf %25, %24 : vector<8x128xf32>
    %cst_21 = arith.constant 5.000000e-01 : f32
    %27 = vector.broadcast %cst_21 : f32 to vector<8x128xf32>
    %28 = arith.addf %27, %26 : vector<8x128xf32>
    %29 = vector.extract_strided_slice %18 {offsets = [0, 256], sizes = [8, 128], strides = [1, 1]} : vector<8x512xf32> to vector<8x128xf32>
    %30 = vector.extract_strided_slice %18 {offsets = [0, 384], sizes = [8, 128], strides = [1, 1]} : vector<8x512xf32> to vector<8x128xf32>
    %cst_22 = arith.constant 5.000000e-01 : f32
    %31 = vector.broadcast %cst_22 : f32 to vector<8x128xf32>
    %32 = arith.mulf %31, %30 : vector<8x128xf32>
    %cst_23 = arith.constant 5.000000e-01 : f32
    %33 = vector.broadcast %cst_23 : f32 to vector<8x128xf32>
    %34 = arith.addf %33, %32 : vector<8x128xf32>
    %35 = arith.mulf %28, %12 : vector<8x128xf32>
    %36 = arith.mulf %23, %29 : vector<8x128xf32>
    %37 = arith.addf %35, %36 : vector<8x128xf32>
    %38 = math.tanh %37 : vector<8x128xf32>
    %39 = arith.mulf %34, %38 : vector<8x128xf32>
    %c8 = arith.constant 8 : index
    %c0_24 = arith.constant 0 : index
    %40 = vector.load %arg11[%c8, %c0_24] : memref<64x512xf32, #tpu.memory_space<vmem>>, vector<8x512xf32>
    %41 = arith.truncf %39 : vector<8x128xf32> to vector<8x128xbf16>
    %c0_25 = arith.constant 0 : index
    %c0_26 = arith.constant 0 : index
    %42 = vector.load %arg4[%c0_25, %c0_26] : memref<128x512xbf16, #tpu.memory_space<vmem>>, vector<128x512xbf16>
    %cst_27 = arith.constant dense<0.000000e+00> : vector<8x512xf32>
    %43 = tpu.matmul %41, %42, %cst_27 {dimension_numbers = #tpu.dot_dimension_numbers<[1], [0], [0], [1], [0, 0, 1, 1], [], []>} : vector<8x128xbf16>, vector<128x512xbf16>, vector<8x512xf32> -> vector<8x512xf32>
    %44 = arith.addf %40, %43 : vector<8x512xf32>
    %45 = math.tanh %44 : vector<8x512xf32>
    %46 = vector.extract_strided_slice %45 {offsets = [0, 0], sizes = [8, 128], strides = [1, 1]} : vector<8x512xf32> to vector<8x128xf32>
    %cst_28 = arith.constant 5.000000e-01 : f32
    %47 = vector.broadcast %cst_28 : f32 to vector<8x128xf32>
    %48 = arith.mulf %47, %46 : vector<8x128xf32>
    %cst_29 = arith.constant 5.000000e-01 : f32
    %49 = vector.broadcast %cst_29 : f32 to vector<8x128xf32>
    %50 = arith.addf %49, %48 : vector<8x128xf32>
    %51 = vector.extract_strided_slice %45 {offsets = [0, 128], sizes = [8, 128], strides = [1, 1]} : vector<8x512xf32> to vector<8x128xf32>
    %cst_30 = arith.constant 5.000000e-01 : f32
    %52 = vector.broadcast %cst_30 : f32 to vector<8x128xf32>
    %53 = arith.mulf %52, %51 : vector<8x128xf32>
    %cst_31 = arith.constant 5.000000e-01 : f32
    %54 = vector.broadcast %cst_31 : f32 to vector<8x128xf32>
    %55 = arith.addf %54, %53 : vector<8x128xf32>
    %56 = vector.extract_strided_slice %45 {offsets = [0, 256], sizes = [8, 128], strides = [1, 1]} : vector<8x512xf32> to vector<8x128xf32>
    %57 = vector.extract_strided_slice %45 {offsets = [0, 384], sizes = [8, 128], strides = [1, 1]} : vector<8x512xf32> to vector<8x128xf32>
    %cst_32 = arith.constant 5.000000e-01 : f32
    %58 = vector.broadcast %cst_32 : f32 to vector<8x128xf32>
    %59 = arith.mulf %58, %57 : vector<8x128xf32>
    %cst_33 = arith.constant 5.000000e-01 : f32
    %60 = vector.broadcast %cst_33 : f32 to vector<8x128xf32>
    %61 = arith.addf %60, %59 : vector<8x128xf32>
    %62 = arith.mulf %55, %37 : vector<8x128xf32>
    %63 = arith.mulf %50, %56 : vector<8x128xf32>
    %64 = arith.addf %62, %63 : vector<8x128xf32>
    %65 = math.tanh %64 : vector<8x128xf32>
    %66 = arith.mulf %61, %65 : vector<8x128xf32>
    %c16 = arith.constant 16 : index
    %c0_34 = arith.constant 0 : index
    %67 = vector.load %arg11[%c16, %c0_34] : memref<64x512xf32, #tpu.memory_space<vmem>>, vector<8x512xf32>
    %68 = arith.truncf %66 : vector<8x128xf32> to vector<8x128xbf16>
    %c0_35 = arith.constant 0 : index
    %c0_36 = arith.constant 0 : index
    %69 = vector.load %arg4[%c0_35, %c0_36] : memref<128x512xbf16, #tpu.memory_space<vmem>>, vector<128x512xbf16>
    %cst_37 = arith.constant dense<0.000000e+00> : vector<8x512xf32>
    %70 = tpu.matmul %68, %69, %cst_37 {dimension_numbers = #tpu.dot_dimension_numbers<[1], [0], [0], [1], [0, 0, 1, 1], [], []>} : vector<8x128xbf16>, vector<128x512xbf16>, vector<8x512xf32> -> vector<8x512xf32>
    %71 = arith.addf %67, %70 : vector<8x512xf32>
    %72 = math.tanh %71 : vector<8x512xf32>
    %73 = vector.extract_strided_slice %72 {offsets = [0, 0], sizes = [8, 128], strides = [1, 1]} : vector<8x512xf32> to vector<8x128xf32>
    %cst_38 = arith.constant 5.000000e-01 : f32
    %74 = vector.broadcast %cst_38 : f32 to vector<8x128xf32>
    %75 = arith.mulf %74, %73 : vector<8x128xf32>
    %cst_39 = arith.constant 5.000000e-01 : f32
    %76 = vector.broadcast %cst_39 : f32 to vector<8x128xf32>
    %77 = arith.addf %76, %75 : vector<8x128xf32>
    %78 = vector.extract_strided_slice %72 {offsets = [0, 128], sizes = [8, 128], strides = [1, 1]} : vector<8x512xf32> to vector<8x128xf32>
    %cst_40 = arith.constant 5.000000e-01 : f32
    %79 = vector.broadcast %cst_40 : f32 to vector<8x128xf32>
    %80 = arith.mulf %79, %78 : vector<8x128xf32>
    %cst_41 = arith.constant 5.000000e-01 : f32
    %81 = vector.broadcast %cst_41 : f32 to vector<8x128xf32>
    %82 = arith.addf %81, %80 : vector<8x128xf32>
    %83 = vector.extract_strided_slice %72 {offsets = [0, 256], sizes = [8, 128], strides = [1, 1]} : vector<8x512xf32> to vector<8x128xf32>
    %84 = vector.extract_strided_slice %72 {offsets = [0, 384], sizes = [8, 128], strides = [1, 1]} : vector<8x512xf32> to vector<8x128xf32>
    %cst_42 = arith.constant 5.000000e-01 : f32
    %85 = vector.broadcast %cst_42 : f32 to vector<8x128xf32>
    %86 = arith.mulf %85, %84 : vector<8x128xf32>
    %cst_43 = arith.constant 5.000000e-01 : f32
    %87 = vector.broadcast %cst_43 : f32 to vector<8x128xf32>
    %88 = arith.addf %87, %86 : vector<8x128xf32>
    %89 = arith.mulf %82, %64 : vector<8x128xf32>
    %90 = arith.mulf %77, %83 : vector<8x128xf32>
    %91 = arith.addf %89, %90 : vector<8x128xf32>
    %92 = math.tanh %91 : vector<8x128xf32>
    %93 = arith.mulf %88, %92 : vector<8x128xf32>
    %c24 = arith.constant 24 : index
    %c0_44 = arith.constant 0 : index
    %94 = vector.load %arg11[%c24, %c0_44] : memref<64x512xf32, #tpu.memory_space<vmem>>, vector<8x512xf32>
    %95 = arith.truncf %93 : vector<8x128xf32> to vector<8x128xbf16>
    %c0_45 = arith.constant 0 : index
    %c0_46 = arith.constant 0 : index
    %96 = vector.load %arg4[%c0_45, %c0_46] : memref<128x512xbf16, #tpu.memory_space<vmem>>, vector<128x512xbf16>
    %cst_47 = arith.constant dense<0.000000e+00> : vector<8x512xf32>
    %97 = tpu.matmul %95, %96, %cst_47 {dimension_numbers = #tpu.dot_dimension_numbers<[1], [0], [0], [1], [0, 0, 1, 1], [], []>} : vector<8x128xbf16>, vector<128x512xbf16>, vector<8x512xf32> -> vector<8x512xf32>
    %98 = arith.addf %94, %97 : vector<8x512xf32>
    %99 = math.tanh %98 : vector<8x512xf32>
    %100 = vector.extract_strided_slice %99 {offsets = [0, 0], sizes = [8, 128], strides = [1, 1]} : vector<8x512xf32> to vector<8x128xf32>
    %cst_48 = arith.constant 5.000000e-01 : f32
    %101 = vector.broadcast %cst_48 : f32 to vector<8x128xf32>
    %102 = arith.mulf %101, %100 : vector<8x128xf32>
    %cst_49 = arith.constant 5.000000e-01 : f32
    %103 = vector.broadcast %cst_49 : f32 to vector<8x128xf32>
    %104 = arith.addf %103, %102 : vector<8x128xf32>
    %105 = vector.extract_strided_slice %99 {offsets = [0, 128], sizes = [8, 128], strides = [1, 1]} : vector<8x512xf32> to vector<8x128xf32>
    %cst_50 = arith.constant 5.000000e-01 : f32
    %106 = vector.broadcast %cst_50 : f32 to vector<8x128xf32>
    %107 = arith.mulf %106, %105 : vector<8x128xf32>
    %cst_51 = arith.constant 5.000000e-01 : f32
    %108 = vector.broadcast %cst_51 : f32 to vector<8x128xf32>
    %109 = arith.addf %108, %107 : vector<8x128xf32>
    %110 = vector.extract_strided_slice %99 {offsets = [0, 256], sizes = [8, 128], strides = [1, 1]} : vector<8x512xf32> to vector<8x128xf32>
    %111 = vector.extract_strided_slice %99 {offsets = [0, 384], sizes = [8, 128], strides = [1, 1]} : vector<8x512xf32> to vector<8x128xf32>
    %cst_52 = arith.constant 5.000000e-01 : f32
    %112 = vector.broadcast %cst_52 : f32 to vector<8x128xf32>
    %113 = arith.mulf %112, %111 : vector<8x128xf32>
    %cst_53 = arith.constant 5.000000e-01 : f32
    %114 = vector.broadcast %cst_53 : f32 to vector<8x128xf32>
    %115 = arith.addf %114, %113 : vector<8x128xf32>
    %116 = arith.mulf %109, %91 : vector<8x128xf32>
    %117 = arith.mulf %104, %110 : vector<8x128xf32>
    %118 = arith.addf %116, %117 : vector<8x128xf32>
    %119 = math.tanh %118 : vector<8x128xf32>
    %120 = arith.mulf %115, %119 : vector<8x128xf32>
    %c32 = arith.constant 32 : index
    %c0_54 = arith.constant 0 : index
    %121 = vector.load %arg11[%c32, %c0_54] : memref<64x512xf32, #tpu.memory_space<vmem>>, vector<8x512xf32>
    %122 = arith.truncf %120 : vector<8x128xf32> to vector<8x128xbf16>
    %c0_55 = arith.constant 0 : index
    %c0_56 = arith.constant 0 : index
    %123 = vector.load %arg4[%c0_55, %c0_56] : memref<128x512xbf16, #tpu.memory_space<vmem>>, vector<128x512xbf16>
    %cst_57 = arith.constant dense<0.000000e+00> : vector<8x512xf32>
    %124 = tpu.matmul %122, %123, %cst_57 {dimension_numbers = #tpu.dot_dimension_numbers<[1], [0], [0], [1], [0, 0, 1, 1], [], []>} : vector<8x128xbf16>, vector<128x512xbf16>, vector<8x512xf32> -> vector<8x512xf32>
    %125 = arith.addf %121, %124 : vector<8x512xf32>
    %126 = math.tanh %125 : vector<8x512xf32>
    %127 = vector.extract_strided_slice %126 {offsets = [0, 0], sizes = [8, 128], strides = [1, 1]} : vector<8x512xf32> to vector<8x128xf32>
    %cst_58 = arith.constant 5.000000e-01 : f32
    %128 = vector.broadcast %cst_58 : f32 to vector<8x128xf32>
    %129 = arith.mulf %128, %127 : vector<8x128xf32>
    %cst_59 = arith.constant 5.000000e-01 : f32
    %130 = vector.broadcast %cst_59 : f32 to vector<8x128xf32>
    %131 = arith.addf %130, %129 : vector<8x128xf32>
    %132 = vector.extract_strided_slice %126 {offsets = [0, 128], sizes = [8, 128], strides = [1, 1]} : vector<8x512xf32> to vector<8x128xf32>
    %cst_60 = arith.constant 5.000000e-01 : f32
    %133 = vector.broadcast %cst_60 : f32 to vector<8x128xf32>
    %134 = arith.mulf %133, %132 : vector<8x128xf32>
    %cst_61 = arith.constant 5.000000e-01 : f32
    %135 = vector.broadcast %cst_61 : f32 to vector<8x128xf32>
    %136 = arith.addf %135, %134 : vector<8x128xf32>
    %137 = vector.extract_strided_slice %126 {offsets = [0, 256], sizes = [8, 128], strides = [1, 1]} : vector<8x512xf32> to vector<8x128xf32>
    %138 = vector.extract_strided_slice %126 {offsets = [0, 384], sizes = [8, 128], strides = [1, 1]} : vector<8x512xf32> to vector<8x128xf32>
    %cst_62 = arith.constant 5.000000e-01 : f32
    %139 = vector.broadcast %cst_62 : f32 to vector<8x128xf32>
    %140 = arith.mulf %139, %138 : vector<8x128xf32>
    %cst_63 = arith.constant 5.000000e-01 : f32
    %141 = vector.broadcast %cst_63 : f32 to vector<8x128xf32>
    %142 = arith.addf %141, %140 : vector<8x128xf32>
    %143 = arith.mulf %136, %118 : vector<8x128xf32>
    %144 = arith.mulf %131, %137 : vector<8x128xf32>
    %145 = arith.addf %143, %144 : vector<8x128xf32>
    %146 = math.tanh %145 : vector<8x128xf32>
    %147 = arith.mulf %142, %146 : vector<8x128xf32>
    %c40 = arith.constant 40 : index
    %c0_64 = arith.constant 0 : index
    %148 = vector.load %arg11[%c40, %c0_64] : memref<64x512xf32, #tpu.memory_space<vmem>>, vector<8x512xf32>
    %149 = arith.truncf %147 : vector<8x128xf32> to vector<8x128xbf16>
    %c0_65 = arith.constant 0 : index
    %c0_66 = arith.constant 0 : index
    %150 = vector.load %arg4[%c0_65, %c0_66] : memref<128x512xbf16, #tpu.memory_space<vmem>>, vector<128x512xbf16>
    %cst_67 = arith.constant dense<0.000000e+00> : vector<8x512xf32>
    %151 = tpu.matmul %149, %150, %cst_67 {dimension_numbers = #tpu.dot_dimension_numbers<[1], [0], [0], [1], [0, 0, 1, 1], [], []>} : vector<8x128xbf16>, vector<128x512xbf16>, vector<8x512xf32> -> vector<8x512xf32>
    %152 = arith.addf %148, %151 : vector<8x512xf32>
    %153 = math.tanh %152 : vector<8x512xf32>
    %154 = vector.extract_strided_slice %153 {offsets = [0, 0], sizes = [8, 128], strides = [1, 1]} : vector<8x512xf32> to vector<8x128xf32>
    %cst_68 = arith.constant 5.000000e-01 : f32
    %155 = vector.broadcast %cst_68 : f32 to vector<8x128xf32>
    %156 = arith.mulf %155, %154 : vector<8x128xf32>
    %cst_69 = arith.constant 5.000000e-01 : f32
    %157 = vector.broadcast %cst_69 : f32 to vector<8x128xf32>
    %158 = arith.addf %157, %156 : vector<8x128xf32>
    %159 = vector.extract_strided_slice %153 {offsets = [0, 128], sizes = [8, 128], strides = [1, 1]} : vector<8x512xf32> to vector<8x128xf32>
    %cst_70 = arith.constant 5.000000e-01 : f32
    %160 = vector.broadcast %cst_70 : f32 to vector<8x128xf32>
    %161 = arith.mulf %160, %159 : vector<8x128xf32>
    %cst_71 = arith.constant 5.000000e-01 : f32
    %162 = vector.broadcast %cst_71 : f32 to vector<8x128xf32>
    %163 = arith.addf %162, %161 : vector<8x128xf32>
    %164 = vector.extract_strided_slice %153 {offsets = [0, 256], sizes = [8, 128], strides = [1, 1]} : vector<8x512xf32> to vector<8x128xf32>
    %165 = vector.extract_strided_slice %153 {offsets = [0, 384], sizes = [8, 128], strides = [1, 1]} : vector<8x512xf32> to vector<8x128xf32>
    %cst_72 = arith.constant 5.000000e-01 : f32
    %166 = vector.broadcast %cst_72 : f32 to vector<8x128xf32>
    %167 = arith.mulf %166, %165 : vector<8x128xf32>
    %cst_73 = arith.constant 5.000000e-01 : f32
    %168 = vector.broadcast %cst_73 : f32 to vector<8x128xf32>
    %169 = arith.addf %168, %167 : vector<8x128xf32>
    %170 = arith.mulf %163, %145 : vector<8x128xf32>
    %171 = arith.mulf %158, %164 : vector<8x128xf32>
    %172 = arith.addf %170, %171 : vector<8x128xf32>
    %173 = math.tanh %172 : vector<8x128xf32>
    %174 = arith.mulf %169, %173 : vector<8x128xf32>
    %c48 = arith.constant 48 : index
    %c0_74 = arith.constant 0 : index
    %175 = vector.load %arg11[%c48, %c0_74] : memref<64x512xf32, #tpu.memory_space<vmem>>, vector<8x512xf32>
    %176 = arith.truncf %174 : vector<8x128xf32> to vector<8x128xbf16>
    %c0_75 = arith.constant 0 : index
    %c0_76 = arith.constant 0 : index
    %177 = vector.load %arg4[%c0_75, %c0_76] : memref<128x512xbf16, #tpu.memory_space<vmem>>, vector<128x512xbf16>
    %cst_77 = arith.constant dense<0.000000e+00> : vector<8x512xf32>
    %178 = tpu.matmul %176, %177, %cst_77 {dimension_numbers = #tpu.dot_dimension_numbers<[1], [0], [0], [1], [0, 0, 1, 1], [], []>} : vector<8x128xbf16>, vector<128x512xbf16>, vector<8x512xf32> -> vector<8x512xf32>
    %179 = arith.addf %175, %178 : vector<8x512xf32>
    %180 = math.tanh %179 : vector<8x512xf32>
    %181 = vector.extract_strided_slice %180 {offsets = [0, 0], sizes = [8, 128], strides = [1, 1]} : vector<8x512xf32> to vector<8x128xf32>
    %cst_78 = arith.constant 5.000000e-01 : f32
    %182 = vector.broadcast %cst_78 : f32 to vector<8x128xf32>
    %183 = arith.mulf %182, %181 : vector<8x128xf32>
    %cst_79 = arith.constant 5.000000e-01 : f32
    %184 = vector.broadcast %cst_79 : f32 to vector<8x128xf32>
    %185 = arith.addf %184, %183 : vector<8x128xf32>
    %186 = vector.extract_strided_slice %180 {offsets = [0, 128], sizes = [8, 128], strides = [1, 1]} : vector<8x512xf32> to vector<8x128xf32>
    %cst_80 = arith.constant 5.000000e-01 : f32
    %187 = vector.broadcast %cst_80 : f32 to vector<8x128xf32>
    %188 = arith.mulf %187, %186 : vector<8x128xf32>
    %cst_81 = arith.constant 5.000000e-01 : f32
    %189 = vector.broadcast %cst_81 : f32 to vector<8x128xf32>
    %190 = arith.addf %189, %188 : vector<8x128xf32>
    %191 = vector.extract_strided_slice %180 {offsets = [0, 256], sizes = [8, 128], strides = [1, 1]} : vector<8x512xf32> to vector<8x128xf32>
    %192 = vector.extract_strided_slice %180 {offsets = [0, 384], sizes = [8, 128], strides = [1, 1]} : vector<8x512xf32> to vector<8x128xf32>
    %cst_82 = arith.constant 5.000000e-01 : f32
    %193 = vector.broadcast %cst_82 : f32 to vector<8x128xf32>
    %194 = arith.mulf %193, %192 : vector<8x128xf32>
    %cst_83 = arith.constant 5.000000e-01 : f32
    %195 = vector.broadcast %cst_83 : f32 to vector<8x128xf32>
    %196 = arith.addf %195, %194 : vector<8x128xf32>
    %197 = arith.mulf %190, %172 : vector<8x128xf32>
    %198 = arith.mulf %185, %191 : vector<8x128xf32>
    %199 = arith.addf %197, %198 : vector<8x128xf32>
    %200 = math.tanh %199 : vector<8x128xf32>
    %201 = arith.mulf %196, %200 : vector<8x128xf32>
    %c56 = arith.constant 56 : index
    %c0_84 = arith.constant 0 : index
    %202 = vector.load %arg11[%c56, %c0_84] : memref<64x512xf32, #tpu.memory_space<vmem>>, vector<8x512xf32>
    %203 = arith.truncf %201 : vector<8x128xf32> to vector<8x128xbf16>
    %c0_85 = arith.constant 0 : index
    %c0_86 = arith.constant 0 : index
    %204 = vector.load %arg4[%c0_85, %c0_86] : memref<128x512xbf16, #tpu.memory_space<vmem>>, vector<128x512xbf16>
    %cst_87 = arith.constant dense<0.000000e+00> : vector<8x512xf32>
    %205 = tpu.matmul %203, %204, %cst_87 {dimension_numbers = #tpu.dot_dimension_numbers<[1], [0], [0], [1], [0, 0, 1, 1], [], []>} : vector<8x128xbf16>, vector<128x512xbf16>, vector<8x512xf32> -> vector<8x512xf32>
    %206 = arith.addf %202, %205 : vector<8x512xf32>
    %207 = math.tanh %206 : vector<8x512xf32>
    %208 = vector.extract_strided_slice %207 {offsets = [0, 0], sizes = [8, 128], strides = [1, 1]} : vector<8x512xf32> to vector<8x128xf32>
    %cst_88 = arith.constant 5.000000e-01 : f32
    %209 = vector.broadcast %cst_88 : f32 to vector<8x128xf32>
    %210 = arith.mulf %209, %208 : vector<8x128xf32>
    %cst_89 = arith.constant 5.000000e-01 : f32
    %211 = vector.broadcast %cst_89 : f32 to vector<8x128xf32>
    %212 = arith.addf %211, %210 : vector<8x128xf32>
    %213 = vector.extract_strided_slice %207 {offsets = [0, 128], sizes = [8, 128], strides = [1, 1]} : vector<8x512xf32> to vector<8x128xf32>
    %cst_90 = arith.constant 5.000000e-01 : f32
    %214 = vector.broadcast %cst_90 : f32 to vector<8x128xf32>
    %215 = arith.mulf %214, %213 : vector<8x128xf32>
    %cst_91 = arith.constant 5.000000e-01 : f32
    %216 = vector.broadcast %cst_91 : f32 to vector<8x128xf32>
    %217 = arith.addf %216, %215 : vector<8x128xf32>
    %218 = vector.extract_strided_slice %207 {offsets = [0, 256], sizes = [8, 128], strides = [1, 1]} : vector<8x512xf32> to vector<8x128xf32>
    %219 = vector.extract_strided_slice %207 {offsets = [0, 384], sizes = [8, 128], strides = [1, 1]} : vector<8x512xf32> to vector<8x128xf32>
    %cst_92 = arith.constant 5.000000e-01 : f32
    %220 = vector.broadcast %cst_92 : f32 to vector<8x128xf32>
    %221 = arith.mulf %220, %219 : vector<8x128xf32>
    %cst_93 = arith.constant 5.000000e-01 : f32
    %222 = vector.broadcast %cst_93 : f32 to vector<8x128xf32>
    %223 = arith.addf %222, %221 : vector<8x128xf32>
    %224 = arith.mulf %217, %199 : vector<8x128xf32>
    %225 = arith.mulf %212, %218 : vector<8x128xf32>
    %226 = arith.addf %224, %225 : vector<8x128xf32>
    %227 = math.tanh %226 : vector<8x128xf32>
    %228 = arith.mulf %223, %227 : vector<8x128xf32>
    %c0_94 = arith.constant 0 : index
    %c0_95 = arith.constant 0 : index
    %229 = vector.load %arg9[%c0_94, %c0_95] : memref<8x128xf32, #tpu.memory_space<vmem>>, vector<8x128xf32>
    tpu.vector_store %arg9[%c0_94, %c0_95], %228 {strides = array<i32>} : memref<8x128xf32, #tpu.memory_space<vmem>>, vector<8x128xf32>,
    %c0_96 = arith.constant 0 : index
    %c0_97 = arith.constant 0 : index
    %230 = vector.load %arg10[%c0_96, %c0_97] : memref<8x128xf32, #tpu.memory_space<vmem>>, vector<8x128xf32>
    tpu.vector_store %arg10[%c0_96, %c0_97], %226 {strides = array<i32>} : memref<8x128xf32, #tpu.memory_space<vmem>>, vector<8x128xf32>,
    %c0_i32_98 = arith.constant 0 : i32
    %231 = arith.cmpi eq, %arg1, %c0_i32_98 : i32
    %232 = arith.extui %231 : i1 to i32
    %c0_i32_99 = arith.constant 0 : i32
    %233 = arith.cmpi ne, %232, %c0_i32_99 : i32
    scf.if %233 {
      %234 = arith.truncf %228 : vector<8x128xf32> to vector<8x128xbf16>
      %c0_100 = arith.constant 0 : index
      %c0_101 = arith.constant 0 : index
      %235 = vector.load %arg6[%c0_100, %c0_101] : memref<128x128xbf16, #tpu.memory_space<vmem>>, vector<128x128xbf16>
      %cst_102 = arith.constant dense<0.000000e+00> : vector<8x128xf32>
      %236 = tpu.matmul %234, %235, %cst_102 {dimension_numbers = #tpu.dot_dimension_numbers<[1], [0], [0], [1], [0, 0, 1, 1], [], []>} : vector<8x128xbf16>, vector<128x128xbf16>, vector<8x128xf32> -> vector<8x128xf32>
      %c0_103 = arith.constant 0 : index
      %c0_104 = arith.constant 0 : index
      %237 = vector.load %arg7[%c0_103, %c0_104] : memref<1x128xf32, #tpu.memory_space<vmem>>, vector<1x128xf32>
      %238 = vector.broadcast %237 : vector<1x128xf32> to vector<8x128xf32>
      %239 = arith.addf %236, %238 : vector<8x128xf32>
      %c0_105 = arith.constant 0 : index
      %c0_106 = arith.constant 0 : index
      %240 = vector.load %arg8[%c0_105, %c0_106] : memref<8x128xf32, #tpu.memory_space<vmem>>, vector<8x128xf32>
      tpu.vector_store %arg8[%c0_105, %c0_106], %239 {strides = array<i32>} : memref<8x128xf32, #tpu.memory_space<vmem>>, vector<8x128xf32>,
    } else {
    }
    return
  }
  func.func @transform_0(%arg0: i32, %arg1: i32) -> (i32, i32, i32) {
    %c0_i32 = arith.constant 0 : i32
    %c0_i32_0 = arith.constant 0 : i32
    return %arg0, %arg1, %c0_i32 : i32, i32, i32
  }
  func.func @transform_1(%arg0: i32, %arg1: i32) -> (i32, i32) {
    %c0_i32 = arith.constant 0 : i32
    %c0_i32_0 = arith.constant 0 : i32
    %c0_i32_1 = arith.constant 0 : i32
    return %c0_i32, %c0_i32_0 : i32, i32
  }
  func.func @transform_2(%arg0: i32, %arg1: i32) -> (i32, i32) {
    %c0_i32 = arith.constant 0 : i32
    %c0_i32_0 = arith.constant 0 : i32
    %c0_i32_1 = arith.constant 0 : i32
    return %c0_i32, %c0_i32_0 : i32, i32
  }
  func.func @transform_3(%arg0: i32, %arg1: i32) -> (i32, i32) {
    %c0_i32 = arith.constant 0 : i32
    %c0_i32_0 = arith.constant 0 : i32
    %c0_i32_1 = arith.constant 0 : i32
    return %c0_i32, %c0_i32_0 : i32, i32
  }
  func.func @transform_4(%arg0: i32, %arg1: i32) -> (i32, i32) {
    %c0_i32 = arith.constant 0 : i32
    %c0_i32_0 = arith.constant 0 : i32
    %c0_i32_1 = arith.constant 0 : i32
    return %c0_i32, %c0_i32_0 : i32, i32
  }
  func.func @transform_5(%arg0: i32, %arg1: i32) -> (i32, i32) {
    %c0_i32 = arith.constant 0 : i32
    %c0_i32_0 = arith.constant 0 : i32
    %c0_i32_1 = arith.constant 0 : i32
    return %c0_i32, %c0_i32_0 : i32, i32
  }
  func.func @transform_6(%arg0: i32, %arg1: i32) -> (i32, i32) {
    %c0_i32 = arith.constant 0 : i32
    %c0_i32_0 = arith.constant 0 : i32
    return %arg0, %c0_i32 : i32, i32
  }
}

</mosaic_0001>

<llo_original>
// kernel: tpu_custom_call.1
$region0: #{tpu_custom_call.1}
  #allocation0 [shape = 'u32[]', space=smem, size = 0x4, offset = 0x4, fixed_abs, tag = 'smem constant byte address 0x4 - core index']
  #allocation1 [shape = 'u32[144,128]{1,0:T(1,128)}', space=vmem, size = 0x12000, scoped, tag = 'internal scratch']
  #allocation2 [shape = 'f32[8,128]{1,0:T(8,128)}', space=vmem, size = 0x1000, scoped, tag = 'scratch operand']
  #allocation3 [shape = 'f32[8,128]{1,0:T(8,128)}', space=vmem, size = 0x1000, scoped, tag = 'scratch operand']
  #allocation4 [shape = 'f32[64,512]{1,0:T(8,128)}', space=vmem, size = 0x20000, scoped, tag = 'scratch operand']
  %s0 = inlined_call_operand.vmem [shape: bf16[1,64,16], index: 0, kind: input, shape index: {}]
  %s1 = inlined_call_operand.vmem [shape: bf16[16,512], index: 1, kind: input, shape index: {}]
  %s2 = inlined_call_operand.hbm [shape: bf16[128,512], index: 2, kind: input, shape index: {}]
  %s3 = inlined_call_operand.vmem [shape: f32[1,512], index: 3, kind: input, shape index: {}]
  %s4 = inlined_call_operand.hbm [shape: bf16[128,128], index: 4, kind: input, shape index: {}]
  %s5 = inlined_call_operand.vmem [shape: f32[1,128], index: 5, kind: input, shape index: {}]
  %s6 = inlined_call_operand.hbm [shape: f32[8,128], index: 6, kind: output, shape index: {}]
  %s7 = sld [smem:[#allocation0]]
  $region50: #{tpu_custom_call.1} parent=0
    _
  %s9 = ssub.s32 1, %s7
  %s10 = scalar_select 0, %s9, %s7
  $region1: #{tpu_custom_call.1} parent=0
    #allocation5 [shape = 'u8[131072]{0}', space=vmem, size = 0x20000, scoped, tag = 'input window, operand 2, single buffered']
    #allocation6 [shape = 's32[1]{0}', space=sflag, size = 0x4, scoped, tag = 'scoped memory for tpu_custom_call.1']
    #allocation7 [shape = 's32[1]{0}', space=sflag, size = 0x4, scoped, tag = 'scoped memory for tpu_custom_call.1']
    #allocation8 [shape = 'u8[32768]{0}', space=vmem, size = 0x8000, scoped, tag = 'input window, operand 4, single buffered']
    #allocation9 [shape = 's32[1]{0}', space=sflag, size = 0x4, scoped, tag = 'scoped memory for tpu_custom_call.1']
    #allocation10 [shape = 'u8[4096]{0}', space=vmem, size = 0x1000, scoped, tag = 'output window, operand 0, single buffered']
    %11 = vsyncpa [#allocation6], 0
    %12 = vsyncpa [#allocation9], 0
    %13 = vsyncpa [#allocation7], 0
    // Predicated region
    $region2: #{tpu_custom_call.1} parent=1 // pred_check
      _
    $region3: #{tpu_custom_call.1} parent=1 // pred_check_branch
      %15 = sbr.rel (0) target = $region5
    $region4: #{tpu_custom_call.1} parent=1 // pred_region
      _
    $region5: #{tpu_custom_call.1} parent=1 // pred_fallthru
      _
    // Predicated region
    $region6: #{tpu_custom_call.1} parent=1 // pred_check
      _
    $region7: #{tpu_custom_call.1} parent=1 // pred_check_branch
      %17 = sbr.rel (0) target = $region9
    $region8: #{tpu_custom_call.1} parent=1 // pred_region
      _
    $region9: #{tpu_custom_call.1} parent=1 // pred_fallthru
      _
    // Predicated region
    $region10: #{tpu_custom_call.1} parent=1 // pred_check
      _
    $region11: #{tpu_custom_call.1} parent=1 // pred_check_branch
      %19 = sbr.rel (0) target = $region13
    $region12: #{tpu_custom_call.1} parent=1 // pred_region
      %s21 = ssub.s32 4096, 4096
      %22 = vsyncadd [#allocation6], %s21
      %s23 = sshll.u32 [#allocation5], 4
      %s24 = int_to_ptr.vmem [resolvable:$true] %s23
      %29 = dma.hbm_to_vmem [thread:$0]  %s2, 4096, %s24, [#allocation6], 256, 256, 16
    $region13: #{tpu_custom_call.1} parent=1 // pred_fallthru
      _
    // Predicated region
    $region14: #{tpu_custom_call.1} parent=1 // pred_check
      _
    $region15: #{tpu_custom_call.1} parent=1 // pred_check_branch
      %31 = sbr.rel (0) target = $region17
    $region16: #{tpu_custom_call.1} parent=1 // pred_region
      _
    $region17: #{tpu_custom_call.1} parent=1 // pred_fallthru
      _
    // Predicated region
    $region18: #{tpu_custom_call.1} parent=1 // pred_check
      _
    $region19: #{tpu_custom_call.1} parent=1 // pred_check_branch
      %33 = sbr.rel (0) target = $region21
    $region20: #{tpu_custom_call.1} parent=1 // pred_region
      %s35 = ssub.s32 1024, 1024
      %36 = vsyncadd [#allocation9], %s35
      %s37 = sshll.u32 [#allocation8], 4
      %s38 = int_to_ptr.vmem [resolvable:$true] %s37
      %43 = dma.hbm_to_vmem [thread:$0]  %s4, 1024, %s38, [#allocation9], 64, 64, 4
    $region21: #{tpu_custom_call.1} parent=1 // pred_fallthru
      _
    // Predicated region
    $region22: #{tpu_custom_call.1} parent=1 // pred_check
      _
    $region23: #{tpu_custom_call.1} parent=1 // pred_check_branch
      %45 = sbr.rel (0) target = $region25
    $region24: #{tpu_custom_call.1} parent=1 // pred_region
      _
    $region25: #{tpu_custom_call.1} parent=1 // pred_fallthru
      _
    // Predicated region
    $region26: #{tpu_custom_call.1} parent=1 // pred_check
      _
    $region27: #{tpu_custom_call.1} parent=1 // pred_check_branch
      %47 = sbr.rel (0) target = $region29
    $region28: #{tpu_custom_call.1} parent=1 // pred_region
      %48 = dma.done [#allocation6], 4096
    $region29: #{tpu_custom_call.1} parent=1 // pred_fallthru
      _
    // Predicated region
    $region30: #{tpu_custom_call.1} parent=1 // pred_check
      _
    $region31: #{tpu_custom_call.1} parent=1 // pred_check_branch
      %50 = sbr.rel (0) target = $region33
    $region32: #{tpu_custom_call.1} parent=1 // pred_region
      %51 = dma.done [#allocation9], 1024
    $region33: #{tpu_custom_call.1} parent=1 // pred_fallthru
      _
    %p53 = scmp.eq.s32.totalorder 0, 0
    // Predicated region
    $region34: #{tpu_custom_call.1} parent=1 // pred_check
      %p54 = pneg %p53
    $region35: #{tpu_custom_call.1} parent=1 // pred_check_branch
      %56 = sbr.rel (%p54) target = $region37
    $region36: #{tpu_custom_call.1} parent=1 // pred_region
      %57 = vst [vmem:[#allocation2] sm:$0xff] 0.0
      %58 = vst [vmem:[#allocation3] sm:$0xff] 0.0
    $region37: #{tpu_custom_call.1} parent=1 // pred_fallthru
      _
    %v59 = vld [vmem:[%s0] sm:$0xf]
    %v60 = vld [vmem:[%s0 + $0x4] sm:$0xf]
    %v61 = vld [vmem:[%s0 + $0x8] sm:$0xf]
    %v62 = vld [vmem:[%s0 + $0xc] sm:$0xf]
    %v63 = vld [vmem:[%s0 + $0x10] sm:$0xf]
    %v64 = vld [vmem:[%s0 + $0x14] sm:$0xf]
    %v65 = vld [vmem:[%s0 + $0x18] sm:$0xf]
    %v66 = vld [vmem:[%s0 + $0x1c] sm:$0xf]
    %v67 = vld [vmem:[%s1] sm:$0xff]
    %v68 = vld [vmem:[%s1 + $0x8] sm:$0xff]
    %v69 = vld [vmem:[%s1 + $0x10] sm:$0xff]
    %v70 = vld [vmem:[%s1 + $0x18] sm:$0xff]
    %v71 = vld [vmem:[%s3] sm:$0xf]
    %v73 = vlaneseq
    %v74 = vshrl.u32 %v73, 7
    %v75 = vsub.s32 0, %v74
    %v76 = vrot.slane %v71, %v75
    %v77 = vlaneseq
    %v78 = vshrl.u32 %v77, 7
    %v79 = vsub.s32 1, %v78
    %v80 = vrot.slane %v71, %v79
    %v81 = vlaneseq
    %v82 = vshrl.u32 %v81, 7
    %v83 = vsub.s32 2, %v82
    %v84 = vrot.slane %v71, %v83
    %v85 = vlaneseq
    %v86 = vshrl.u32 %v85, 7
    %v87 = vsub.s32 3, %v86
    %v88 = vrot.slane %v71, %v87
    %v101 = vunpack.c.l.b16 %v59
    %v102 = vunpack.c.l.b16 %v60
    %v103 = vunpack.c.l.b16 %v61
    %v104 = vunpack.c.l.b16 %v62
    %v105 = vunpack.c.l.b16 %v63
    %v106 = vunpack.c.l.b16 %v64
    %v107 = vunpack.c.l.b16 %v65
    %v108 = vunpack.c.l.b16 %v66
    %v109 = vpack.c.b16 %v102, %v101
    %v110 = vpack.c.b16 %v104, %v103
    %v111 = vpack.c.b16 %v106, %v105
    %v112 = vpack.c.b16 %v108, %v107
    %v117 = vunpack.c.l.b16 %v67
    %v118 = vunpack.c.h.b16 %v67
    %v119 = vunpack.c.l.b16 %v68
    %v120 = vunpack.c.h.b16 %v68
    %v121 = vunpack.c.l.b16 %v69
    %v122 = vunpack.c.h.b16 %v69
    %v123 = vunpack.c.l.b16 %v70
    %v124 = vunpack.c.h.b16 %v70
    %v125 = vpack.c.b16 %v121, %v117
    %v126 = vpack.c.b16 %v122, %v118
    %v127 = vpack.c.b16 %v123, %v119
    %v128 = vpack.c.b16 %v124, %v120
    %vm133 = vcmask 130048
    %v135 = vsel %vm133, %v109, 0
    %v138 = vsel %vm133, %v110, 0
    %v141 = vsel %vm133, %v111, 0
    %v144 = vsel %vm133, %v112, 0
    %146 = vmatprep.subr.bf16.mxu0 %v126
    %147 = vmatpush1.bf16.msra.mxu0 %v125
    %148 = vmatprep.subr.bf16.mxu0 0
    %149 = vmatpush1.bf16.msra.mxu0 0
    %150 = vmatprep.subr.bf16.mxu0 0
    %151 = vmatpush1.bf16.msra.mxu0 0
    %152 = vmatprep.subr.bf16.mxu0 0
    %153 = vmatpush1.bf16.msra.mxu0 0
    %154 = vmatprep.subr.bf16.mxu0 0
    %155 = vmatpush1.bf16.msra.mxu0 0
    %156 = vmatprep.subr.bf16.mxu0 0
    %157 = vmatpush1.bf16.msra.mxu0 0
    %158 = vmatprep.subr.bf16.mxu0 0
    %159 = vmatpush1.bf16.msra.mxu0 0
    %160 = vmatprep.subr.bf16.mxu0 0
    %161 = vmatpush1.bf16.msra.mxu0 0
    %162 = vmatprep.subr.bf16.mxu0 0
    %163 = vmatpush1.bf16.msra.mxu0 0
    %164 = vmatprep.subr.bf16.mxu0 0
    %165 = vmatpush1.bf16.msra.mxu0 0
    %166 = vmatprep.subr.bf16.mxu0 0
    %167 = vmatpush1.bf16.msra.mxu0 0
    %168 = vmatprep.subr.bf16.mxu0 0
    %169 = vmatpush1.bf16.msra.mxu0 0
    %170 = vmatprep.subr.bf16.mxu0 0
    %171 = vmatpush1.bf16.msra.mxu0 0
    %172 = vmatprep.subr.bf16.mxu0 0
    %173 = vmatpush1.bf16.msra.mxu0 0
    %174 = vmatprep.subr.bf16.mxu0 0
    %175 = vmatpush1.bf16.msra.mxu0 0
    %176 = vmatprep.subr.bf16.mxu0 0
    %177 = vmatpush1.bf16.msra.mxu0 0
    %178 = vmatprep.mubr.bf16.mxu0 0
    %179 = vmatmul.mubr.bf16.gmra.mrb[0].mxu0 %v135
    %v180 = vpop.f32.mrb[0].mxu0
    %v181 = vadd.f32 %v76, %v180
    %v182 = vpop.f32.mrb[0].mxu0
    %v183 = vadd.f32 %v80, %v182
    %v184 = vpop.f32.mrb[0].mxu0
    %v185 = vadd.f32 %v76, %v184
    %v186 = vpop.f32.mrb[0].mxu0
    %v187 = vadd.f32 %v80, %v186
    %188 = vmatprep.mubr.bf16.mxu0 0
    %189 = vmatmul.mubr.bf16.gmra.mrb[0].mxu0 %v138
    %v190 = vpop.f32.mrb[0].mxu0
    %v191 = vadd.f32 %v76, %v190
    %v192 = vpop.f32.mrb[0].mxu0
    %v193 = vadd.f32 %v80, %v192
    %v194 = vpop.f32.mrb[0].mxu0
    %v195 = vadd.f32 %v76, %v194
    %v196 = vpop.f32.mrb[0].mxu0
    %v197 = vadd.f32 %v80, %v196
    %198 = vmatprep.mubr.bf16.mxu0 0
    %199 = vmatmul.mubr.bf16.gmra.mrb[0].mxu0 %v141
    %v200 = vpop.f32.mrb[0].mxu0
    %v201 = vadd.f32 %v76, %v200
    %v202 = vpop.f32.mrb[0].mxu0
    %v203 = vadd.f32 %v80, %v202
    %v204 = vpop.f32.mrb[0].mxu0
    %v205 = vadd.f32 %v76, %v204
    %v206 = vpop.f32.mrb[0].mxu0
    %v207 = vadd.f32 %v80, %v206
    %208 = vmatprep.mubr.bf16.mxu0 0
    %209 = vmatmul.mubr.bf16.gmra.mrb[0].mxu0 %v144
    %v210 = vpop.f32.mrb[0].mxu0
    %v211 = vadd.f32 %v76, %v210
    %v212 = vpop.f32.mrb[0].mxu0
    %v213 = vadd.f32 %v80, %v212
    %v214 = vpop.f32.mrb[0].mxu0
    %v215 = vadd.f32 %v76, %v214
    %v216 = vpop.f32.mrb[0].mxu0
    %v217 = vadd.f32 %v80, %v216
    %218 = vdwg.mxu0
    %219 = vmatprep.subr.bf16.mxu0 %v128
    %220 = vmatpush1.bf16.msra.mxu0 %v127
    %221 = vmatprep.subr.bf16.mxu0 0
    %222 = vmatpush1.bf16.msra.mxu0 0
    %223 = vmatprep.subr.bf16.mxu0 0
    %224 = vmatpush1.bf16.msra.mxu0 0
    %225 = vmatprep.subr.bf16.mxu0 0
    %226 = vmatpush1.bf16.msra.mxu0 0
    %227 = vmatprep.subr.bf16.mxu0 0
    %228 = vmatpush1.bf16.msra.mxu0 0
    %229 = vmatprep.subr.bf16.mxu0 0
    %230 = vmatpush1.bf16.msra.mxu0 0
    %231 = vmatprep.subr.bf16.mxu0 0
    %232 = vmatpush1.bf16.msra.mxu0 0
    %233 = vmatprep.subr.bf16.mxu0 0
    %234 = vmatpush1.bf16.msra.mxu0 0
    %235 = vmatprep.subr.bf16.mxu0 0
    %236 = vmatpush1.bf16.msra.mxu0 0
    %237 = vmatprep.subr.bf16.mxu0 0
    %238 = vmatpush1.bf16.msra.mxu0 0
    %239 = vmatprep.subr.bf16.mxu0 0
    %240 = vmatpush1.bf16.msra.mxu0 0
    %241 = vmatprep.subr.bf16.mxu0 0
    %242 = vmatpush1.bf16.msra.mxu0 0
    %243 = vmatprep.subr.bf16.mxu0 0
    %244 = vmatpush1.bf16.msra.mxu0 0
    %245 = vmatprep.subr.bf16.mxu0 0
    %246 = vmatpush1.bf16.msra.mxu0 0
    %247 = vmatprep.subr.bf16.mxu0 0
    %248 = vmatpush1.bf16.msra.mxu0 0
    %249 = vmatprep.subr.bf16.mxu0 0
    %250 = vmatpush1.bf16.msra.mxu0 0
    %251 = vmatprep.mubr.bf16.mxu0 0
    %252 = vmatmul.mubr.bf16.gmra.mrb[0].mxu0 %v135
    %v253 = vpop.f32.mrb[0].mxu0
    %v254 = vadd.f32 %v84, %v253
    %v255 = vpop.f32.mrb[0].mxu0
    %v256 = vadd.f32 %v88, %v255
    %v257 = vpop.f32.mrb[0].mxu0
    %v258 = vadd.f32 %v84, %v257
    %v259 = vpop.f32.mrb[0].mxu0
    %v260 = vadd.f32 %v88, %v259
    %261 = vmatprep.mubr.bf16.mxu0 0
    %262 = vmatmul.mubr.bf16.gmra.mrb[0].mxu0 %v138
    %v263 = vpop.f32.mrb[0].mxu0
    %v264 = vadd.f32 %v84, %v263
    %v265 = vpop.f32.mrb[0].mxu0
    %v266 = vadd.f32 %v88, %v265
    %v267 = vpop.f32.mrb[0].mxu0
    %v268 = vadd.f32 %v84, %v267
    %v269 = vpop.f32.mrb[0].mxu0
    %v270 = vadd.f32 %v88, %v269
    %271 = vmatprep.mubr.bf16.mxu0 0
    %272 = vmatmul.mubr.bf16.gmra.mrb[0].mxu0 %v141
    %v273 = vpop.f32.mrb[0].mxu0
    %v274 = vadd.f32 %v84, %v273
    %v275 = vpop.f32.mrb[0].mxu0
    %v276 = vadd.f32 %v88, %v275
    %v277 = vpop.f32.mrb[0].mxu0
    %v278 = vadd.f32 %v84, %v277
    %v279 = vpop.f32.mrb[0].mxu0
    %v280 = vadd.f32 %v88, %v279
    %281 = vmatprep.mubr.bf16.mxu0 0
    %282 = vmatmul.mubr.bf16.gmra.mrb[0].mxu0 %v144
    %v283 = vpop.f32.mrb[0].mxu0
    %v284 = vadd.f32 %v84, %v283
    %v285 = vpop.f32.mrb[0].mxu0
    %v286 = vadd.f32 %v88, %v285
    %v287 = vpop.f32.mrb[0].mxu0
    %v288 = vadd.f32 %v84, %v287
    %v289 = vpop.f32.mrb[0].mxu0
    %v290 = vadd.f32 %v88, %v289
    %291 = vdwg.mxu0
    %292 = vst [vmem:[#allocation4] sm:$0xff] %v181
    %293 = vst [vmem:[#allocation4 + $0x8] sm:$0xff] %v183
    %294 = vst [vmem:[#allocation4 + $0x10] sm:$0xff] %v254
    %295 = vst [vmem:[#allocation4 + $0x18] sm:$0xff] %v256
    %296 = vst [vmem:[#allocation4 + $0x20] sm:$0xff] %v185
    %297 = vst [vmem:[#allocation4 + $0x28] sm:$0xff] %v187
    %298 = vst [vmem:[#allocation4 + $0x30] sm:$0xff] %v258
    %299 = vst [vmem:[#allocation4 + $0x38] sm:$0xff] %v260
    %300 = vst [vmem:[#allocation4 + $0x40] sm:$0xff] %v191
    %301 = vst [vmem:[#allocation4 + $0x48] sm:$0xff] %v193
    %302 = vst [vmem:[#allocation4 + $0x50] sm:$0xff] %v264
    %303 = vst [vmem:[#allocation4 + $0x58] sm:$0xff] %v266
    %304 = vst [vmem:[#allocation4 + $0x60] sm:$0xff] %v195
    %305 = vst [vmem:[#allocation4 + $0x68] sm:$0xff] %v197
    %306 = vst [vmem:[#allocation4 + $0x70] sm:$0xff] %v268
    %307 = vst [vmem:[#allocation4 + $0x78] sm:$0xff] %v270
    %308 = vst [vmem:[#allocation4 + $0x80] sm:$0xff] %v201
    %309 = vst [vmem:[#allocation4 + $0x88] sm:$0xff] %v203
    %310 = vst [vmem:[#allocation4 + $0x90] sm:$0xff] %v274
    %311 = vst [vmem:[#allocation4 + $0x98] sm:$0xff] %v276
    %312 = vst [vmem:[#allocation4 + $0xa0] sm:$0xff] %v205
    %313 = vst [vmem:[#allocation4 + $0xa8] sm:$0xff] %v207
    %314 = vst [vmem:[#allocation4 + $0xb0] sm:$0xff] %v278
    %315 = vst [vmem:[#allocation4 + $0xb8] sm:$0xff] %v280
    %316 = vst [vmem:[#allocation4 + $0xc0] sm:$0xff] %v211
    %317 = vst [vmem:[#allocation4 + $0xc8] sm:$0xff] %v213
    %318 = vst [vmem:[#allocation4 + $0xd0] sm:$0xff] %v284
    %319 = vst [vmem:[#allocation4 + $0xd8] sm:$0xff] %v286
    %320 = vst [vmem:[#allocation4 + $0xe0] sm:$0xff] %v215
    %321 = vst [vmem:[#allocation4 + $0xe8] sm:$0xff] %v217
    %322 = vst [vmem:[#allocation4 + $0xf0] sm:$0xff] %v288
    %323 = vst [vmem:[#allocation4 + $0xf8] sm:$0xff] %v290
    %v324 = vld [vmem:[#allocation2] sm:$0xff]
    %v325 = vld [vmem:[#allocation3] sm:$0xff]
    %v326 = vld [vmem:[#allocation4] sm:$0xff]
    %v327 = vld [vmem:[#allocation4 + $0x8] sm:$0xff]
    %v328 = vld [vmem:[#allocation4 + $0x10] sm:$0xff]
    %v329 = vld [vmem:[#allocation4 + $0x18] sm:$0xff]
    %v330 = vpack.c.bf16 %v324, %v324
    %v331 = vld [vmem:[#allocation5] sm:$0xff]
    %v332 = vld [vmem:[#allocation5 + $0x8] sm:$0xff]
    %v333 = vld [vmem:[#allocation5 + $0x10] sm:$0xff]
    %v334 = vld [vmem:[#allocation5 + $0x18] sm:$0xff]
    %v335 = vld [vmem:[#allocation5 + $0x20] sm:$0xff]
    %v336 = vld [vmem:[#allocation5 + $0x28] sm:$0xff]
    %v337 = vld [vmem:[#allocation5 + $0x30] sm:$0xff]
    %v338 = vld [vmem:[#allocation5 + $0x38] sm:$0xff]
    %v339 = vld [vmem:[#allocation5 + $0x40] sm:$0xff]
    %v340 = vld [vmem:[#allocation5 + $0x48] sm:$0xff]
    %v341 = vld [vmem:[#allocation5 + $0x50] sm:$0xff]
    %v342 = vld [vmem:[#allocation5 + $0x58] sm:$0xff]
    %v343 = vld [vmem:[#allocation5 + $0x60] sm:$0xff]
    %v344 = vld [vmem:[#allocation5 + $0x68] sm:$0xff]
    %v345 = vld [vmem:[#allocation5 + $0x70] sm:$0xff]
    %v346 = vld [vmem:[#allocation5 + $0x78] sm:$0xff]
    %v347 = vld [vmem:[#allocation5 + $0x80] sm:$0xff]
    %v348 = vld [vmem:[#allocation5 + $0x88] sm:$0xff]
    %v349 = vld [vmem:[#allocation5 + $0x90] sm:$0xff]
    %v350 = vld [vmem:[#allocation5 + $0x98] sm:$0xff]
    %v351 = vld [vmem:[#allocation5 + $0xa0] sm:$0xff]
    %v352 = vld [vmem:[#allocation5 + $0xa8] sm:$0xff]
    %v353 = vld [vmem:[#allocation5 + $0xb0] sm:$0xff]
    %v354 = vld [vmem:[#allocation5 + $0xb8] sm:$0xff]
    %v355 = vld [vmem:[#allocation5 + $0xc0] sm:$0xff]
    %v356 = vld [vmem:[#allocation5 + $0xc8] sm:$0xff]
    %v357 = vld [vmem:[#allocation5 + $0xd0] sm:$0xff]
    %v358 = vld [vmem:[#allocation5 + $0xd8] sm:$0xff]
    %v359 = vld [vmem:[#allocation5 + $0xe0] sm:$0xff]
    %v360 = vld [vmem:[#allocation5 + $0xe8] sm:$0xff]
    %v361 = vld [vmem:[#allocation5 + $0xf0] sm:$0xff]
    %v362 = vld [vmem:[#allocation5 + $0xf8] sm:$0xff]
    %v395 = vunpack.c.l.b16 %v331
    %v396 = vunpack.c.h.b16 %v331
    %v397 = vunpack.c.l.b16 %v332
    %v398 = vunpack.c.h.b16 %v332
    %v399 = vunpack.c.l.b16 %v333
    %v400 = vunpack.c.h.b16 %v333
    %v401 = vunpack.c.l.b16 %v334
    %v402 = vunpack.c.h.b16 %v334
    %v403 = vunpack.c.l.b16 %v335
    %v404 = vunpack.c.h.b16 %v335
    %v405 = vunpack.c.l.b16 %v336
    %v406 = vunpack.c.h.b16 %v336
    %v407 = vunpack.c.l.b16 %v337
    %v408 = vunpack.c.h.b16 %v337
    %v409 = vunpack.c.l.b16 %v338
    %v410 = vunpack.c.h.b16 %v338
    %v411 = vunpack.c.l.b16 %v339
    %v412 = vunpack.c.h.b16 %v339
    %v413 = vunpack.c.l.b16 %v340
    %v414 = vunpack.c.h.b16 %v340
    %v415 = vunpack.c.l.b16 %v341
    %v416 = vunpack.c.h.b16 %v341
    %v417 = vunpack.c.l.b16 %v342
    %v418 = vunpack.c.h.b16 %v342
    %v419 = vunpack.c.l.b16 %v343
    %v420 = vunpack.c.h.b16 %v343
    %v421 = vunpack.c.l.b16 %v344
    %v422 = vunpack.c.h.b16 %v344
    %v423 = vunpack.c.l.b16 %v345
    %v424 = vunpack.c.h.b16 %v345
    %v425 = vunpack.c.l.b16 %v346
    %v426 = vunpack.c.h.b16 %v346
    %v427 = vunpack.c.l.b16 %v347
    %v428 = vunpack.c.h.b16 %v347
    %v429 = vunpack.c.l.b16 %v348
    %v430 = vunpack.c.h.b16 %v348
    %v431 = vunpack.c.l.b16 %v349
    %v432 = vunpack.c.h.b16 %v349
    %v433 = vunpack.c.l.b16 %v350
    %v434 = vunpack.c.h.b16 %v350
    %v435 = vunpack.c.l.b16 %v351
    %v436 = vunpack.c.h.b16 %v351
    %v437 = vunpack.c.l.b16 %v352
    %v438 = vunpack.c.h.b16 %v352
    %v439 = vunpack.c.l.b16 %v353
    %v440 = vunpack.c.h.b16 %v353
    %v441 = vunpack.c.l.b16 %v354
    %v442 = vunpack.c.h.b16 %v354
    %v443 = vunpack.c.l.b16 %v355
    %v444 = vunpack.c.h.b16 %v355
    %v445 = vunpack.c.l.b16 %v356
    %v446 = vunpack.c.h.b16 %v356
    %v447 = vunpack.c.l.b16 %v357
    %v448 = vunpack.c.h.b16 %v357
    %v449 = vunpack.c.l.b16 %v358
    %v450 = vunpack.c.h.b16 %v358
    %v451 = vunpack.c.l.b16 %v359
    %v452 = vunpack.c.h.b16 %v359
    %v453 = vunpack.c.l.b16 %v360
    %v454 = vunpack.c.h.b16 %v360
    %v455 = vunpack.c.l.b16 %v361
    %v456 = vunpack.c.h.b16 %v361
    %v457 = vunpack.c.l.b16 %v362
    %v458 = vunpack.c.h.b16 %v362
    %v459 = vpack.c.b16 %v399, %v395
    %v460 = vpack.c.b16 %v400, %v396
    %v461 = vpack.c.b16 %v401, %v397
    %v462 = vpack.c.b16 %v402, %v398
    %v463 = vpack.c.b16 %v407, %v403
    %v464 = vpack.c.b16 %v408, %v404
    %v465 = vpack.c.b16 %v409, %v405
    %v466 = vpack.c.b16 %v410, %v406
    %v467 = vpack.c.b16 %v415, %v411
    %v468 = vpack.c.b16 %v416, %v412
    %v469 = vpack.c.b16 %v417, %v413
    %v470 = vpack.c.b16 %v418, %v414
    %v471 = vpack.c.b16 %v423, %v419
    %v472 = vpack.c.b16 %v424, %v420
    %v473 = vpack.c.b16 %v425, %v421
    %v474 = vpack.c.b16 %v426, %v422
    %v475 = vpack.c.b16 %v431, %v427
    %v476 = vpack.c.b16 %v432, %v428
    %v477 = vpack.c.b16 %v433, %v429
    %v478 = vpack.c.b16 %v434, %v430
    %v479 = vpack.c.b16 %v439, %v435
    %v480 = vpack.c.b16 %v440, %v436
    %v481 = vpack.c.b16 %v441, %v437
    %v482 = vpack.c.b16 %v442, %v438
    %v483 = vpack.c.b16 %v447, %v443
    %v484 = vpack.c.b16 %v448, %v444
    %v485 = vpack.c.b16 %v449, %v445
    %v486 = vpack.c.b16 %v450, %v446
    %v487 = vpack.c.b16 %v455, %v451
    %v488 = vpack.c.b16 %v456, %v452
    %v489 = vpack.c.b16 %v457, %v453
    %v490 = vpack.c.b16 %v458, %v454
    %523 = vmatprep.subr.bf16.mxu0 %v460
    %524 = vmatpush1.bf16.msra.mxu0 %v459
    %525 = vmatprep.subr.bf16.mxu0 %v464
    %526 = vmatpush1.bf16.msra.mxu0 %v463
    %527 = vmatprep.subr.bf16.mxu0 %v468
    %528 = vmatpush1.bf16.msra.mxu0 %v467
    %529 = vmatprep.subr.bf16.mxu0 %v472
    %530 = vmatpush1.bf16.msra.mxu0 %v471
    %531 = vmatprep.subr.bf16.mxu0 %v476
    %532 = vmatpush1.bf16.msra.mxu0 %v475
    %533 = vmatprep.subr.bf16.mxu0 %v480
    %534 = vmatpush1.bf16.msra.mxu0 %v479
    %535 = vmatprep.subr.bf16.mxu0 %v484
    %536 = vmatpush1.bf16.msra.mxu0 %v483
    %537 = vmatprep.subr.bf16.mxu0 %v488
    %538 = vmatpush1.bf16.msra.mxu0 %v487
    %539 = vmatprep.subr.bf16.mxu0 0
    %540 = vmatpush1.bf16.msra.mxu0 0
    %541 = vmatprep.subr.bf16.mxu0 0
    %542 = vmatpush1.bf16.msra.mxu0 0
    %543 = vmatprep.subr.bf16.mxu0 0
    %544 = vmatpush1.bf16.msra.mxu0 0
    %545 = vmatprep.subr.bf16.mxu0 0
    %546 = vmatpush1.bf16.msra.mxu0 0
    %547 = vmatprep.subr.bf16.mxu0 0
    %548 = vmatpush1.bf16.msra.mxu0 0
    %549 = vmatprep.subr.bf16.mxu0 0
    %550 = vmatpush1.bf16.msra.mxu0 0
    %551 = vmatprep.subr.bf16.mxu0 0
    %552 = vmatpush1.bf16.msra.mxu0 0
    %553 = vmatprep.subr.bf16.mxu0 0
    %554 = vmatpush1.bf16.msra.mxu0 0
    %555 = vmatprep.mubr.bf16.mxu0 0
    %556 = vmatmul.mubr.bf16.gmra.mrb[0].mxu0 %v330
    %v557 = vpop.f32.mrb[0].mxu0
    %v558 = vadd.f32 0.0, %v557
    %v559 = vpop.f32.mrb[0].mxu0
    %v560 = vadd.f32 0.0, %v559
    %v561 = vpop.f32.mrb[0].mxu0
    %v562 = vpop.f32.mrb[0].mxu0
    %563 = vdwg.mxu0
    %564 = vmatprep.subr.bf16.mxu0 %v462
    %565 = vmatpush1.bf16.msra.mxu0 %v461
    %566 = vmatprep.subr.bf16.mxu0 %v466
    %567 = vmatpush1.bf16.msra.mxu0 %v465
    %568 = vmatprep.subr.bf16.mxu0 %v470
    %569 = vmatpush1.bf16.msra.mxu0 %v469
    %570 = vmatprep.subr.bf16.mxu0 %v474
    %571 = vmatpush1.bf16.msra.mxu0 %v473
    %572 = vmatprep.subr.bf16.mxu0 %v478
    %573 = vmatpush1.bf16.msra.mxu0 %v477
    %574 = vmatprep.subr.bf16.mxu0 %v482
    %575 = vmatpush1.bf16.msra.mxu0 %v481
    %576 = vmatprep.subr.bf16.mxu0 %v486
    %577 = vmatpush1.bf16.msra.mxu0 %v485
    %578 = vmatprep.subr.bf16.mxu0 %v490
    %579 = vmatpush1.bf16.msra.mxu0 %v489
    %580 = vmatprep.subr.bf16.mxu0 0
    %581 = vmatpush1.bf16.msra.mxu0 0
    %582 = vmatprep.subr.bf16.mxu0 0
    %583 = vmatpush1.bf16.msra.mxu0 0
    %584 = vmatprep.subr.bf16.mxu0 0
    %585 = vmatpush1.bf16.msra.mxu0 0
    %586 = vmatprep.subr.bf16.mxu0 0
    %587 = vmatpush1.bf16.msra.mxu0 0
    %588 = vmatprep.subr.bf16.mxu0 0
    %589 = vmatpush1.bf16.msra.mxu0 0
    %590 = vmatprep.subr.bf16.mxu0 0
    %591 = vmatpush1.bf16.msra.mxu0 0
    %592 = vmatprep.subr.bf16.mxu0 0
    %593 = vmatpush1.bf16.msra.mxu0 0
    %594 = vmatprep.subr.bf16.mxu0 0
    %595 = vmatpush1.bf16.msra.mxu0 0
    %596 = vmatprep.mubr.bf16.mxu0 0
    %597 = vmatmul.mubr.bf16.gmra.mrb[0].mxu0 %v330
    %v598 = vpop.f32.mrb[0].mxu0
    %v599 = vadd.f32 0.0, %v598
    %v600 = vpop.f32.mrb[0].mxu0
    %v601 = vadd.f32 0.0, %v600
    %v602 = vpop.f32.mrb[0].mxu0
    %v603 = vpop.f32.mrb[0].mxu0
    %604 = vdwg.mxu0
    %v605 = vadd.f32 %v326, %v558
    %v606 = vadd.f32 %v327, %v560
    %v607 = vadd.f32 %v328, %v599
    %v608 = vadd.f32 %v329, %v601
    %v609 = vtanh.pop %v605
    %v610 = vtanh.pop %v606
    %v611 = vtanh.pop %v607
    %v612 = vtanh.pop %v608
    %v613 = vmul.f32 %v609, 0.5
    %v614 = vadd.f32 %v613, 0.5
    %v615 = vmul.f32 %v610, 0.5
    %v616 = vadd.f32 %v615, 0.5
    %v617 = vmul.f32 %v612, 0.5
    %v618 = vadd.f32 %v617, 0.5
    %v619 = vmul.f32 %v616, %v325
    %v620 = vmul.f32 %v614, %v611
    %v621 = vadd.f32 %v619, %v620
    %v622 = vtanh.pop %v621
    %v623 = vmul.f32 %v618, %v622
    %v624 = vld [vmem:[#allocation4 + $0x20] sm:$0xff]
    %v625 = vld [vmem:[#allocation4 + $0x28] sm:$0xff]
    %v626 = vld [vmem:[#allocation4 + $0x30] sm:$0xff]
    %v627 = vld [vmem:[#allocation4 + $0x38] sm:$0xff]
    %v628 = vpack.c.bf16 %v623, %v623
    %629 = vmatprep.subr.bf16.mxu0 %v460
    %630 = vmatpush1.bf16.msra.mxu0 %v459
    %631 = vmatprep.subr.bf16.mxu0 %v464
    %632 = vmatpush1.bf16.msra.mxu0 %v463
    %633 = vmatprep.subr.bf16.mxu0 %v468
    %634 = vmatpush1.bf16.msra.mxu0 %v467
    %635 = vmatprep.subr.bf16.mxu0 %v472
    %636 = vmatpush1.bf16.msra.mxu0 %v471
    %637 = vmatprep.subr.bf16.mxu0 %v476
    %638 = vmatpush1.bf16.msra.mxu0 %v475
    %639 = vmatprep.subr.bf16.mxu0 %v480
    %640 = vmatpush1.bf16.msra.mxu0 %v479
    %641 = vmatprep.subr.bf16.mxu0 %v484
    %642 = vmatpush1.bf16.msra.mxu0 %v483
    %643 = vmatprep.subr.bf16.mxu0 %v488
    %644 = vmatpush1.bf16.msra.mxu0 %v487
    %645 = vmatprep.subr.bf16.mxu0 0
    %646 = vmatpush1.bf16.msra.mxu0 0
    %647 = vmatprep.subr.bf16.mxu0 0
    %648 = vmatpush1.bf16.msra.mxu0 0
    %649 = vmatprep.subr.bf16.mxu0 0
    %650 = vmatpush1.bf16.msra.mxu0 0
    %651 = vmatprep.subr.bf16.mxu0 0
    %652 = vmatpush1.bf16.msra.mxu0 0
    %653 = vmatprep.subr.bf16.mxu0 0
    %654 = vmatpush1.bf16.msra.mxu0 0
    %655 = vmatprep.subr.bf16.mxu0 0
    %656 = vmatpush1.bf16.msra.mxu0 0
    %657 = vmatprep.subr.bf16.mxu0 0
    %658 = vmatpush1.bf16.msra.mxu0 0
    %659 = vmatprep.subr.bf16.mxu0 0
    %660 = vmatpush1.bf16.msra.mxu0 0
    %661 = vmatprep.mubr.bf16.mxu0 0
    %662 = vmatmul.mubr.bf16.gmra.mrb[0].mxu0 %v628
    %v663 = vpop.f32.mrb[0].mxu0
    %v664 = vadd.f32 0.0, %v663
    %v665 = vpop.f32.mrb[0].mxu0
    %v666 = vadd.f32 0.0, %v665
    %v667 = vpop.f32.mrb[0].mxu0
    %v668 = vpop.f32.mrb[0].mxu0
    %669 = vdwg.mxu0
    %670 = vmatprep.subr.bf16.mxu0 %v462
    %671 = vmatpush1.bf16.msra.mxu0 %v461
    %672 = vmatprep.subr.bf16.mxu0 %v466
    %673 = vmatpush1.bf16.msra.mxu0 %v465
    %674 = vmatprep.subr.bf16.mxu0 %v470
    %675 = vmatpush1.bf16.msra.mxu0 %v469
    %676 = vmatprep.subr.bf16.mxu0 %v474
    %677 = vmatpush1.bf16.msra.mxu0 %v473
    %678 = vmatprep.subr.bf16.mxu0 %v478
    %679 = vmatpush1.bf16.msra.mxu0 %v477
    %680 = vmatprep.subr.bf16.mxu0 %v482
    %681 = vmatpush1.bf16.msra.mxu0 %v481
    %682 = vmatprep.subr.bf16.mxu0 %v486
    %683 = vmatpush1.bf16.msra.mxu0 %v485
    %684 = vmatprep.subr.bf16.mxu0 %v490
    %685 = vmatpush1.bf16.msra.mxu0 %v489
    %686 = vmatprep.subr.bf16.mxu0 0
    %687 = vmatpush1.bf16.msra.mxu0 0
    %688 = vmatprep.subr.bf16.mxu0 0
    %689 = vmatpush1.bf16.msra.mxu0 0
    %690 = vmatprep.subr.bf16.mxu0 0
    %691 = vmatpush1.bf16.msra.mxu0 0
    %692 = vmatprep.subr.bf16.mxu0 0
    %693 = vmatpush1.bf16.msra.mxu0 0
    %694 = vmatprep.subr.bf16.mxu0 0
    %695 = vmatpush1.bf16.msra.mxu0 0
    %696 = vmatprep.subr.bf16.mxu0 0
    %697 = vmatpush1.bf16.msra.mxu0 0
    %698 = vmatprep.subr.bf16.mxu0 0
    %699 = vmatpush1.bf16.msra.mxu0 0
    %700 = vmatprep.subr.bf16.mxu0 0
    %701 = vmatpush1.bf16.msra.mxu0 0
    %702 = vmatprep.mubr.bf16.mxu0 0
    %703 = vmatmul.mubr.bf16.gmra.mrb[0].mxu0 %v628
    %v704 = vpop.f32.mrb[0].mxu0
    %v705 = vadd.f32 0.0, %v704
    %v706 = vpop.f32.mrb[0].mxu0
    %v707 = vadd.f32 0.0, %v706
    %v708 = vpop.f32.mrb[0].mxu0
    %v709 = vpop.f32.mrb[0].mxu0
    %710 = vdwg.mxu0
    %v711 = vadd.f32 %v624, %v664
    %v712 = vadd.f32 %v625, %v666
    %v713 = vadd.f32 %v626, %v705
    %v714 = vadd.f32 %v627, %v707
    %v715 = vtanh.pop %v711
    %v716 = vtanh.pop %v712
    %v717 = vtanh.pop %v713
    %v718 = vtanh.pop %v714
    %v719 = vmul.f32 %v715, 0.5
    %v720 = vadd.f32 %v719, 0.5
    %v721 = vmul.f32 %v716, 0.5
    %v722 = vadd.f32 %v721, 0.5
    %v723 = vmul.f32 %v718, 0.5
    %v724 = vadd.f32 %v723, 0.5
    %v725 = vmul.f32 %v722, %v621
    %v726 = vmul.f32 %v720, %v717
    %v727 = vadd.f32 %v725, %v726
    %v728 = vtanh.pop %v727
    %v729 = vmul.f32 %v724, %v728
    %v730 = vld [vmem:[#allocation4 + $0x40] sm:$0xff]
    %v731 = vld [vmem:[#allocation4 + $0x48] sm:$0xff]
    %v732 = vld [vmem:[#allocation4 + $0x50] sm:$0xff]
    %v733 = vld [vmem:[#allocation4 + $0x58] sm:$0xff]
    %v734 = vpack.c.bf16 %v729, %v729
    %735 = vmatprep.subr.bf16.mxu0 %v460
    %736 = vmatpush1.bf16.msra.mxu0 %v459
    %737 = vmatprep.subr.bf16.mxu0 %v464
    %738 = vmatpush1.bf16.msra.mxu0 %v463
    %739 = vmatprep.subr.bf16.mxu0 %v468
    %740 = vmatpush1.bf16.msra.mxu0 %v467
    %741 = vmatprep.subr.bf16.mxu0 %v472
    %742 = vmatpush1.bf16.msra.mxu0 %v471
    %743 = vmatprep.subr.bf16.mxu0 %v476
    %744 = vmatpush1.bf16.msra.mxu0 %v475
    %745 = vmatprep.subr.bf16.mxu0 %v480
    %746 = vmatpush1.bf16.msra.mxu0 %v479
    %747 = vmatprep.subr.bf16.mxu0 %v484
    %748 = vmatpush1.bf16.msra.mxu0 %v483
    %749 = vmatprep.subr.bf16.mxu0 %v488
    %750 = vmatpush1.bf16.msra.mxu0 %v487
    %751 = vmatprep.subr.bf16.mxu0 0
    %752 = vmatpush1.bf16.msra.mxu0 0
    %753 = vmatprep.subr.bf16.mxu0 0
    %754 = vmatpush1.bf16.msra.mxu0 0
    %755 = vmatprep.subr.bf16.mxu0 0
    %756 = vmatpush1.bf16.msra.mxu0 0
    %757 = vmatprep.subr.bf16.mxu0 0
    %758 = vmatpush1.bf16.msra.mxu0 0
    %759 = vmatprep.subr.bf16.mxu0 0
    %760 = vmatpush1.bf16.msra.mxu0 0
    %761 = vmatprep.subr.bf16.mxu0 0
    %762 = vmatpush1.bf16.msra.mxu0 0
    %763 = vmatprep.subr.bf16.mxu0 0
    %764 = vmatpush1.bf16.msra.mxu0 0
    %765 = vmatprep.subr.bf16.mxu0 0
    %766 = vmatpush1.bf16.msra.mxu0 0
    %767 = vmatprep.mubr.bf16.mxu0 0
    %768 = vmatmul.mubr.bf16.gmra.mrb[0].mxu0 %v734
    %v769 = vpop.f32.mrb[0].mxu0
    %v770 = vadd.f32 0.0, %v769
    %v771 = vpop.f32.mrb[0].mxu0
    %v772 = vadd.f32 0.0, %v771
    %v773 = vpop.f32.mrb[0].mxu0
    %v774 = vpop.f32.mrb[0].mxu0
    %775 = vdwg.mxu0
    %776 = vmatprep.subr.bf16.mxu0 %v462
    %777 = vmatpush1.bf16.msra.mxu0 %v461
    %778 = vmatprep.subr.bf16.mxu0 %v466
    %779 = vmatpush1.bf16.msra.mxu0 %v465
    %780 = vmatprep.subr.bf16.mxu0 %v470
    %781 = vmatpush1.bf16.msra.mxu0 %v469
    %782 = vmatprep.subr.bf16.mxu0 %v474
    %783 = vmatpush1.bf16.msra.mxu0 %v473
    %784 = vmatprep.subr.bf16.mxu0 %v478
    %785 = vmatpush1.bf16.msra.mxu0 %v477
    %786 = vmatprep.subr.bf16.mxu0 %v482
    %787 = vmatpush1.bf16.msra.mxu0 %v481
    %788 = vmatprep.subr.bf16.mxu0 %v486
    %789 = vmatpush1.bf16.msra.mxu0 %v485
    %790 = vmatprep.subr.bf16.mxu0 %v490
    %791 = vmatpush1.bf16.msra.mxu0 %v489
    %792 = vmatprep.subr.bf16.mxu0 0
    %793 = vmatpush1.bf16.msra.mxu0 0
    %794 = vmatprep.subr.bf16.mxu0 0
    %795 = vmatpush1.bf16.msra.mxu0 0
    %796 = vmatprep.subr.bf16.mxu0 0
    %797 = vmatpush1.bf16.msra.mxu0 0
    %798 = vmatprep.subr.bf16.mxu0 0
    %799 = vmatpush1.bf16.msra.mxu0 0
    %800 = vmatprep.subr.bf16.mxu0 0
    %801 = vmatpush1.bf16.msra.mxu0 0
    %802 = vmatprep.subr.bf16.mxu0 0
    %803 = vmatpush1.bf16.msra.mxu0 0
    %804 = vmatprep.subr.bf16.mxu0 0
    %805 = vmatpush1.bf16.msra.mxu0 0
    %806 = vmatprep.subr.bf16.mxu0 0
    %807 = vmatpush1.bf16.msra.mxu0 0
    %808 = vmatprep.mubr.bf16.mxu0 0
    %809 = vmatmul.mubr.bf16.gmra.mrb[0].mxu0 %v734
    %v810 = vpop.f32.mrb[0].mxu0
    %v811 = vadd.f32 0.0, %v810
    %v812 = vpop.f32.mrb[0].mxu0
    %v813 = vadd.f32 0.0, %v812
    %v814 = vpop.f32.mrb[0].mxu0
    %v815 = vpop.f32.mrb[0].mxu0
    %816 = vdwg.mxu0
    %v817 = vadd.f32 %v730, %v770
    %v818 = vadd.f32 %v731, %v772
    %v819 = vadd.f32 %v732, %v811
    %v820 = vadd.f32 %v733, %v813
    %v821 = vtanh.pop %v817
    %v822 = vtanh.pop %v818
    %v823 = vtanh.pop %v819
    %v824 = vtanh.pop %v820
    %v825 = vmul.f32 %v821, 0.5
    %v826 = vadd.f32 %v825, 0.5
    %v827 = vmul.f32 %v822, 0.5
    %v828 = vadd.f32 %v827, 0.5
    %v829 = vmul.f32 %v824, 0.5
    %v830 = vadd.f32 %v829, 0.5
    %v831 = vmul.f32 %v828, %v727
    %v832 = vmul.f32 %v826, %v823
    %v833 = vadd.f32 %v831, %v832
    %v834 = vtanh.pop %v833
    %v835 = vmul.f32 %v830, %v834
    %v836 = vld [vmem:[#allocation4 + $0x60] sm:$0xff]
    %v837 = vld [vmem:[#allocation4 + $0x68] sm:$0xff]
    %v838 = vld [vmem:[#allocation4 + $0x70] sm:$0xff]
    %v839 = vld [vmem:[#allocation4 + $0x78] sm:$0xff]
    %v840 = vpack.c.bf16 %v835, %v835
    %841 = vmatprep.subr.bf16.mxu0 %v460
    %842 = vmatpush1.bf16.msra.mxu0 %v459
    %843 = vmatprep.subr.bf16.mxu0 %v464
    %844 = vmatpush1.bf16.msra.mxu0 %v463
    %845 = vmatprep.subr.bf16.mxu0 %v468
    %846 = vmatpush1.bf16.msra.mxu0 %v467
    %847 = vmatprep.subr.bf16.mxu0 %v472
    %848 = vmatpush1.bf16.msra.mxu0 %v471
    %849 = vmatprep.subr.bf16.mxu0 %v476
    %850 = vmatpush1.bf16.msra.mxu0 %v475
    %851 = vmatprep.subr.bf16.mxu0 %v480
    %852 = vmatpush1.bf16.msra.mxu0 %v479
    %853 = vmatprep.subr.bf16.mxu0 %v484
    %854 = vmatpush1.bf16.msra.mxu0 %v483
    %855 = vmatprep.subr.bf16.mxu0 %v488
    %856 = vmatpush1.bf16.msra.mxu0 %v487
    %857 = vmatprep.subr.bf16.mxu0 0
    %858 = vmatpush1.bf16.msra.mxu0 0
    %859 = vmatprep.subr.bf16.mxu0 0
    %860 = vmatpush1.bf16.msra.mxu0 0
    %861 = vmatprep.subr.bf16.mxu0 0
    %862 = vmatpush1.bf16.msra.mxu0 0
    %863 = vmatprep.subr.bf16.mxu0 0
    %864 = vmatpush1.bf16.msra.mxu0 0
    %865 = vmatprep.subr.bf16.mxu0 0
    %866 = vmatpush1.bf16.msra.mxu0 0
    %867 = vmatprep.subr.bf16.mxu0 0
    %868 = vmatpush1.bf16.msra.mxu0 0
    %869 = vmatprep.subr.bf16.mxu0 0
    %870 = vmatpush1.bf16.msra.mxu0 0
    %871 = vmatprep.subr.bf16.mxu0 0
    %872 = vmatpush1.bf16.msra.mxu0 0
    %873 = vmatprep.mubr.bf16.mxu0 0
    %874 = vmatmul.mubr.bf16.gmra.mrb[0].mxu0 %v840
    %v875 = vpop.f32.mrb[0].mxu0
    %v876 = vadd.f32 0.0, %v875
    %v877 = vpop.f32.mrb[0].mxu0
    %v878 = vadd.f32 0.0, %v877
    %v879 = vpop.f32.mrb[0].mxu0
    %v880 = vpop.f32.mrb[0].mxu0
    %881 = vdwg.mxu0
    %882 = vmatprep.subr.bf16.mxu0 %v462
    %883 = vmatpush1.bf16.msra.mxu0 %v461
    %884 = vmatprep.subr.bf16.mxu0 %v466
    %885 = vmatpush1.bf16.msra.mxu0 %v465
    %886 = vmatprep.subr.bf16.mxu0 %v470
    %887 = vmatpush1.bf16.msra.mxu0 %v469
    %888 = vmatprep.subr.bf16.mxu0 %v474
    %889 = vmatpush1.bf16.msra.mxu0 %v473
    %890 = vmatprep.subr.bf16.mxu0 %v478
    %891 = vmatpush1.bf16.msra.mxu0 %v477
    %892 = vmatprep.subr.bf16.mxu0 %v482
    %893 = vmatpush1.bf16.msra.mxu0 %v481
    %894 = vmatprep.subr.bf16.mxu0 %v486
    %895 = vmatpush1.bf16.msra.mxu0 %v485
    %896 = vmatprep.subr.bf16.mxu0 %v490
    %897 = vmatpush1.bf16.msra.mxu0 %v489
    %898 = vmatprep.subr.bf16.mxu0 0
    %899 = vmatpush1.bf16.msra.mxu0 0
    %900 = vmatprep.subr.bf16.mxu0 0
    %901 = vmatpush1.bf16.msra.mxu0 0
    %902 = vmatprep.subr.bf16.mxu0 0
    %903 = vmatpush1.bf16.msra.mxu0 0
    %904 = vmatprep.subr.bf16.mxu0 0
    %905 = vmatpush1.bf16.msra.mxu0 0
    %906 = vmatprep.subr.bf16.mxu0 0
    %907 = vmatpush1.bf16.msra.mxu0 0
    %908 = vmatprep.subr.bf16.mxu0 0
    %909 = vmatpush1.bf16.msra.mxu0 0
    %910 = vmatprep.subr.bf16.mxu0 0
    %911 = vmatpush1.bf16.msra.mxu0 0
    %912 = vmatprep.subr.bf16.mxu0 0
    %913 = vmatpush1.bf16.msra.mxu0 0
    %914 = vmatprep.mubr.bf16.mxu0 0
    %915 = vmatmul.mubr.bf16.gmra.mrb[0].mxu0 %v840
    %v916 = vpop.f32.mrb[0].mxu0
    %v917 = vadd.f32 0.0, %v916
    %v918 = vpop.f32.mrb[0].mxu0
    %v919 = vadd.f32 0.0, %v918
    %v920 = vpop.f32.mrb[0].mxu0
    %v921 = vpop.f32.mrb[0].mxu0
    %922 = vdwg.mxu0
    %v923 = vadd.f32 %v836, %v876
    %v924 = vadd.f32 %v837, %v878
    %v925 = vadd.f32 %v838, %v917
    %v926 = vadd.f32 %v839, %v919
    %v927 = vtanh.pop %v923
    %v928 = vtanh.pop %v924
    %v929 = vtanh.pop %v925
    %v930 = vtanh.pop %v926
    %v931 = vmul.f32 %v927, 0.5
    %v932 = vadd.f32 %v931, 0.5
    %v933 = vmul.f32 %v928, 0.5
    %v934 = vadd.f32 %v933, 0.5
    %v935 = vmul.f32 %v930, 0.5
    %v936 = vadd.f32 %v935, 0.5
    %v937 = vmul.f32 %v934, %v833
    %v938 = vmul.f32 %v932, %v929
    %v939 = vadd.f32 %v937, %v938
    %v940 = vtanh.pop %v939
    %v941 = vmul.f32 %v936, %v940
    %v942 = vld [vmem:[#allocation4 + $0x80] sm:$0xff]
    %v943 = vld [vmem:[#allocation4 + $0x88] sm:$0xff]
    %v944 = vld [vmem:[#allocation4 + $0x90] sm:$0xff]
    %v945 = vld [vmem:[#allocation4 + $0x98] sm:$0xff]
    %v946 = vpack.c.bf16 %v941, %v941
    %947 = vmatprep.subr.bf16.mxu0 %v460
    %948 = vmatpush1.bf16.msra.mxu0 %v459
    %949 = vmatprep.subr.bf16.mxu0 %v464
    %950 = vmatpush1.bf16.msra.mxu0 %v463
    %951 = vmatprep.subr.bf16.mxu0 %v468
    %952 = vmatpush1.bf16.msra.mxu0 %v467
    %953 = vmatprep.subr.bf16.mxu0 %v472
    %954 = vmatpush1.bf16.msra.mxu0 %v471
    %955 = vmatprep.subr.bf16.mxu0 %v476
    %956 = vmatpush1.bf16.msra.mxu0 %v475
    %957 = vmatprep.subr.bf16.mxu0 %v480
    %958 = vmatpush1.bf16.msra.mxu0 %v479
    %959 = vmatprep.subr.bf16.mxu0 %v484
    %960 = vmatpush1.bf16.msra.mxu0 %v483
    %961 = vmatprep.subr.bf16.mxu0 %v488
    %962 = vmatpush1.bf16.msra.mxu0 %v487
    %963 = vmatprep.subr.bf16.mxu0 0
    %964 = vmatpush1.bf16.msra.mxu0 0
    %965 = vmatprep.subr.bf16.mxu0 0
    %966 = vmatpush1.bf16.msra.mxu0 0
    %967 = vmatprep.subr.bf16.mxu0 0
    %968 = vmatpush1.bf16.msra.mxu0 0
    %969 = vmatprep.subr.bf16.mxu0 0
    %970 = vmatpush1.bf16.msra.mxu0 0
    %971 = vmatprep.subr.bf16.mxu0 0
    %972 = vmatpush1.bf16.msra.mxu0 0
    %973 = vmatprep.subr.bf16.mxu0 0
    %974 = vmatpush1.bf16.msra.mxu0 0
    %975 = vmatprep.subr.bf16.mxu0 0
    %976 = vmatpush1.bf16.msra.mxu0 0
    %977 = vmatprep.subr.bf16.mxu0 0
    %978 = vmatpush1.bf16.msra.mxu0 0
    %979 = vmatprep.mubr.bf16.mxu0 0
    %980 = vmatmul.mubr.bf16.gmra.mrb[0].mxu0 %v946
    %v981 = vpop.f32.mrb[0].mxu0
    %v982 = vadd.f32 0.0, %v981
    %v983 = vpop.f32.mrb[0].mxu0
    %v984 = vadd.f32 0.0, %v983
    %v985 = vpop.f32.mrb[0].mxu0
    %v986 = vpop.f32.mrb[0].mxu0
    %987 = vdwg.mxu0
    %988 = vmatprep.subr.bf16.mxu0 %v462
    %989 = vmatpush1.bf16.msra.mxu0 %v461
    %990 = vmatprep.subr.bf16.mxu0 %v466
    %991 = vmatpush1.bf16.msra.mxu0 %v465
    %992 = vmatprep.subr.bf16.mxu0 %v470
    %993 = vmatpush1.bf16.msra.mxu0 %v469
    %994 = vmatprep.subr.bf16.mxu0 %v474
    %995 = vmatpush1.bf16.msra.mxu0 %v473
    %996 = vmatprep.subr.bf16.mxu0 %v478
    %997 = vmatpush1.bf16.msra.mxu0 %v477
    %998 = vmatprep.subr.bf16.mxu0 %v482
    %999 = vmatpush1.bf16.msra.mxu0 %v481
    %1000 = vmatprep.subr.bf16.mxu0 %v486
    %1001 = vmatpush1.bf16.msra.mxu0 %v485
    %1002 = vmatprep.subr.bf16.mxu0 %v490
    %1003 = vmatpush1.bf16.msra.mxu0 %v489
    %1004 = vmatprep.subr.bf16.mxu0 0
    %1005 = vmatpush1.bf16.msra.mxu0 0
    %1006 = vmatprep.subr.bf16.mxu0 0
    %1007 = vmatpush1.bf16.msra.mxu0 0
    %1008 = vmatprep.subr.bf16.mxu0 0
    %1009 = vmatpush1.bf16.msra.mxu0 0
    %1010 = vmatprep.subr.bf16.mxu0 0
    %1011 = vmatpush1.bf16.msra.mxu0 0
    %1012 = vmatprep.subr.bf16.mxu0 0
    %1013 = vmatpush1.bf16.msra.mxu0 0
    %1014 = vmatprep.subr.bf16.mxu0 0
    %1015 = vmatpush1.bf16.msra.mxu0 0
    %1016 = vmatprep.subr.bf16.mxu0 0
    %1017 = vmatpush1.bf16.msra.mxu0 0
    %1018 = vmatprep.subr.bf16.mxu0 0
    %1019 = vmatpush1.bf16.msra.mxu0 0
    %1020 = vmatprep.mubr.bf16.mxu0 0
    %1021 = vmatmul.mubr.bf16.gmra.mrb[0].mxu0 %v946
    %v1022 = vpop.f32.mrb[0].mxu0
    %v1023 = vadd.f32 0.0, %v1022
    %v1024 = vpop.f32.mrb[0].mxu0
    %v1025 = vadd.f32 0.0, %v1024
    %v1026 = vpop.f32.mrb[0].mxu0
    %v1027 = vpop.f32.mrb[0].mxu0
    %1028 = vdwg.mxu0
    %v1029 = vadd.f32 %v942, %v982
    %v1030 = vadd.f32 %v943, %v984
    %v1031 = vadd.f32 %v944, %v1023
    %v1032 = vadd.f32 %v945, %v1025
    %v1033 = vtanh.pop %v1029
    %v1034 = vtanh.pop %v1030
    %v1035 = vtanh.pop %v1031
    %v1036 = vtanh.pop %v1032
    %v1037 = vmul.f32 %v1033, 0.5
    %v1038 = vadd.f32 %v1037, 0.5
    %v1039 = vmul.f32 %v1034, 0.5
    %v1040 = vadd.f32 %v1039, 0.5
    %v1041 = vmul.f32 %v1036, 0.5
    %v1042 = vadd.f32 %v1041, 0.5
    %v1043 = vmul.f32 %v1040, %v939
    %v1044 = vmul.f32 %v1038, %v1035
    %v1045 = vadd.f32 %v1043, %v1044
    %v1046 = vtanh.pop %v1045
    %v1047 = vmul.f32 %v1042, %v1046
    %v1048 = vld [vmem:[#allocation4 + $0xa0] sm:$0xff]
    %v1049 = vld [vmem:[#allocation4 + $0xa8] sm:$0xff]
    %v1050 = vld [vmem:[#allocation4 + $0xb0] sm:$0xff]
    %v1051 = vld [vmem:[#allocation4 + $0xb8] sm:$0xff]
    %v1052 = vpack.c.bf16 %v1047, %v1047
    %1053 = vmatprep.subr.bf16.mxu0 %v460
    %1054 = vmatpush1.bf16.msra.mxu0 %v459
    %1055 = vmatprep.subr.bf16.mxu0 %v464
    %1056 = vmatpush1.bf16.msra.mxu0 %v463
    %1057 = vmatprep.subr.bf16.mxu0 %v468
    %1058 = vmatpush1.bf16.msra.mxu0 %v467
    %1059 = vmatprep.subr.bf16.mxu0 %v472
    %1060 = vmatpush1.bf16.msra.mxu0 %v471
    %1061 = vmatprep.subr.bf16.mxu0 %v476
    %1062 = vmatpush1.bf16.msra.mxu0 %v475
    %1063 = vmatprep.subr.bf16.mxu0 %v480
    %1064 = vmatpush1.bf16.msra.mxu0 %v479
    %1065 = vmatprep.subr.bf16.mxu0 %v484
    %1066 = vmatpush1.bf16.msra.mxu0 %v483
    %1067 = vmatprep.subr.bf16.mxu0 %v488
    %1068 = vmatpush1.bf16.msra.mxu0 %v487
    %1069 = vmatprep.subr.bf16.mxu0 0
    %1070 = vmatpush1.bf16.msra.mxu0 0
    %1071 = vmatprep.subr.bf16.mxu0 0
    %1072 = vmatpush1.bf16.msra.mxu0 0
    %1073 = vmatprep.subr.bf16.mxu0 0
    %1074 = vmatpush1.bf16.msra.mxu0 0
    %1075 = vmatprep.subr.bf16.mxu0 0
    %1076 = vmatpush1.bf16.msra.mxu0 0
    %1077 = vmatprep.subr.bf16.mxu0 0
    %1078 = vmatpush1.bf16.msra.mxu0 0
    %1079 = vmatprep.subr.bf16.mxu0 0
    %1080 = vmatpush1.bf16.msra.mxu0 0
    %1081 = vmatprep.subr.bf16.mxu0 0
    %1082 = vmatpush1.bf16.msra.mxu0 0
    %1083 = vmatprep.subr.bf16.mxu0 0
    %1084 = vmatpush1.bf16.msra.mxu0 0
    %1085 = vmatprep.mubr.bf16.mxu0 0
    %1086 = vmatmul.mubr.bf16.gmra.mrb[0].mxu0 %v1052
    %v1087 = vpop.f32.mrb[0].mxu0
    %v1088 = vadd.f32 0.0, %v1087
    %v1089 = vpop.f32.mrb[0].mxu0
    %v1090 = vadd.f32 0.0, %v1089
    %v1091 = vpop.f32.mrb[0].mxu0
    %v1092 = vpop.f32.mrb[0].mxu0
    %1093 = vdwg.mxu0
    %1094 = vmatprep.subr.bf16.mxu0 %v462
    %1095 = vmatpush1.bf16.msra.mxu0 %v461
    %1096 = vmatprep.subr.bf16.mxu0 %v466
    %1097 = vmatpush1.bf16.msra.mxu0 %v465
    %1098 = vmatprep.subr.bf16.mxu0 %v470
    %1099 = vmatpush1.bf16.msra.mxu0 %v469
    %1100 = vmatprep.subr.bf16.mxu0 %v474
    %1101 = vmatpush1.bf16.msra.mxu0 %v473
    %1102 = vmatprep.subr.bf16.mxu0 %v478
    %1103 = vmatpush1.bf16.msra.mxu0 %v477
    %1104 = vmatprep.subr.bf16.mxu0 %v482
    %1105 = vmatpush1.bf16.msra.mxu0 %v481
    %1106 = vmatprep.subr.bf16.mxu0 %v486
    %1107 = vmatpush1.bf16.msra.mxu0 %v485
    %1108 = vmatprep.subr.bf16.mxu0 %v490
    %1109 = vmatpush1.bf16.msra.mxu0 %v489
    %1110 = vmatprep.subr.bf16.mxu0 0
    %1111 = vmatpush1.bf16.msra.mxu0 0
    %1112 = vmatprep.subr.bf16.mxu0 0
    %1113 = vmatpush1.bf16.msra.mxu0 0
    %1114 = vmatprep.subr.bf16.mxu0 0
    %1115 = vmatpush1.bf16.msra.mxu0 0
    %1116 = vmatprep.subr.bf16.mxu0 0
    %1117 = vmatpush1.bf16.msra.mxu0 0
    %1118 = vmatprep.subr.bf16.mxu0 0
    %1119 = vmatpush1.bf16.msra.mxu0 0
    %1120 = vmatprep.subr.bf16.mxu0 0
    %1121 = vmatpush1.bf16.msra.mxu0 0
    %1122 = vmatprep.subr.bf16.mxu0 0
    %1123 = vmatpush1.bf16.msra.mxu0 0
    %1124 = vmatprep.subr.bf16.mxu0 0
    %1125 = vmatpush1.bf16.msra.mxu0 0
    %1126 = vmatprep.mubr.bf16.mxu0 0
    %1127 = vmatmul.mubr.bf16.gmra.mrb[0].mxu0 %v1052
    %v1128 = vpop.f32.mrb[0].mxu0
    %v1129 = vadd.f32 0.0, %v1128
    %v1130 = vpop.f32.mrb[0].mxu0
    %v1131 = vadd.f32 0.0, %v1130
    %v1132 = vpop.f32.mrb[0].mxu0
    %v1133 = vpop.f32.mrb[0].mxu0
    %1134 = vdwg.mxu0
    %v1135 = vadd.f32 %v1048, %v1088
    %v1136 = vadd.f32 %v1049, %v1090
    %v1137 = vadd.f32 %v1050, %v1129
    %v1138 = vadd.f32 %v1051, %v1131
    %v1139 = vtanh.pop %v1135
    %v1140 = vtanh.pop %v1136
    %v1141 = vtanh.pop %v1137
    %v1142 = vtanh.pop %v1138
    %v1143 = vmul.f32 %v1139, 0.5
    %v1144 = vadd.f32 %v1143, 0.5
    %v1145 = vmul.f32 %v1140, 0.5
    %v1146 = vadd.f32 %v1145, 0.5
    %v1147 = vmul.f32 %v1142, 0.5
    %v1148 = vadd.f32 %v1147, 0.5
    %v1149 = vmul.f32 %v1146, %v1045
    %v1150 = vmul.f32 %v1144, %v1141
    %v1151 = vadd.f32 %v1149, %v1150
    %v1152 = vtanh.pop %v1151
    %v1153 = vmul.f32 %v1148, %v1152
    %v1154 = vld [vmem:[#allocation4 + $0xc0] sm:$0xff]
    %v1155 = vld [vmem:[#allocation4 + $0xc8] sm:$0xff]
    %v1156 = vld [vmem:[#allocation4 + $0xd0] sm:$0xff]
    %v1157 = vld [vmem:[#allocation4 + $0xd8] sm:$0xff]
    %v1158 = vpack.c.bf16 %v1153, %v1153
    %1159 = vmatprep.subr.bf16.mxu0 %v460
    %1160 = vmatpush1.bf16.msra.mxu0 %v459
    %1161 = vmatprep.subr.bf16.mxu0 %v464
    %1162 = vmatpush1.bf16.msra.mxu0 %v463
    %1163 = vmatprep.subr.bf16.mxu0 %v468
    %1164 = vmatpush1.bf16.msra.mxu0 %v467
    %1165 = vmatprep.subr.bf16.mxu0 %v472
    %1166 = vmatpush1.bf16.msra.mxu0 %v471
    %1167 = vmatprep.subr.bf16.mxu0 %v476
    %1168 = vmatpush1.bf16.msra.mxu0 %v475
    %1169 = vmatprep.subr.bf16.mxu0 %v480
    %1170 = vmatpush1.bf16.msra.mxu0 %v479
    %1171 = vmatprep.subr.bf16.mxu0 %v484
    %1172 = vmatpush1.bf16.msra.mxu0 %v483
    %1173 = vmatprep.subr.bf16.mxu0 %v488
    %1174 = vmatpush1.bf16.msra.mxu0 %v487
    %1175 = vmatprep.subr.bf16.mxu0 0
    %1176 = vmatpush1.bf16.msra.mxu0 0
    %1177 = vmatprep.subr.bf16.mxu0 0
    %1178 = vmatpush1.bf16.msra.mxu0 0
    %1179 = vmatprep.subr.bf16.mxu0 0
    %1180 = vmatpush1.bf16.msra.mxu0 0
    %1181 = vmatprep.subr.bf16.mxu0 0
    %1182 = vmatpush1.bf16.msra.mxu0 0
    %1183 = vmatprep.subr.bf16.mxu0 0
    %1184 = vmatpush1.bf16.msra.mxu0 0
    %1185 = vmatprep.subr.bf16.mxu0 0
    %1186 = vmatpush1.bf16.msra.mxu0 0
    %1187 = vmatprep.subr.bf16.mxu0 0
    %1188 = vmatpush1.bf16.msra.mxu0 0
    %1189 = vmatprep.subr.bf16.mxu0 0
    %1190 = vmatpush1.bf16.msra.mxu0 0
    %1191 = vmatprep.mubr.bf16.mxu0 0
    %1192 = vmatmul.mubr.bf16.gmra.mrb[0].mxu0 %v1158
    %v1193 = vpop.f32.mrb[0].mxu0
    %v1194 = vadd.f32 0.0, %v1193
    %v1195 = vpop.f32.mrb[0].mxu0
    %v1196 = vadd.f32 0.0, %v1195
    %v1197 = vpop.f32.mrb[0].mxu0
    %v1198 = vpop.f32.mrb[0].mxu0
    %1199 = vdwg.mxu0
    %1200 = vmatprep.subr.bf16.mxu0 %v462
    %1201 = vmatpush1.bf16.msra.mxu0 %v461
    %1202 = vmatprep.subr.bf16.mxu0 %v466
    %1203 = vmatpush1.bf16.msra.mxu0 %v465
    %1204 = vmatprep.subr.bf16.mxu0 %v470
    %1205 = vmatpush1.bf16.msra.mxu0 %v469
    %1206 = vmatprep.subr.bf16.mxu0 %v474
    %1207 = vmatpush1.bf16.msra.mxu0 %v473
    %1208 = vmatprep.subr.bf16.mxu0 %v478
    %1209 = vmatpush1.bf16.msra.mxu0 %v477
    %1210 = vmatprep.subr.bf16.mxu0 %v482
    %1211 = vmatpush1.bf16.msra.mxu0 %v481
    %1212 = vmatprep.subr.bf16.mxu0 %v486
    %1213 = vmatpush1.bf16.msra.mxu0 %v485
    %1214 = vmatprep.subr.bf16.mxu0 %v490
    %1215 = vmatpush1.bf16.msra.mxu0 %v489
    %1216 = vmatprep.subr.bf16.mxu0 0
    %1217 = vmatpush1.bf16.msra.mxu0 0
    %1218 = vmatprep.subr.bf16.mxu0 0
    %1219 = vmatpush1.bf16.msra.mxu0 0
    %1220 = vmatprep.subr.bf16.mxu0 0
    %1221 = vmatpush1.bf16.msra.mxu0 0
    %1222 = vmatprep.subr.bf16.mxu0 0
    %1223 = vmatpush1.bf16.msra.mxu0 0
    %1224 = vmatprep.subr.bf16.mxu0 0
    %1225 = vmatpush1.bf16.msra.mxu0 0
    %1226 = vmatprep.subr.bf16.mxu0 0
    %1227 = vmatpush1.bf16.msra.mxu0 0
    %1228 = vmatprep.subr.bf16.mxu0 0
    %1229 = vmatpush1.bf16.msra.mxu0 0
    %1230 = vmatprep.subr.bf16.mxu0 0
    %1231 = vmatpush1.bf16.msra.mxu0 0
    %1232 = vmatprep.mubr.bf16.mxu0 0
    %1233 = vmatmul.mubr.bf16.gmra.mrb[0].mxu0 %v1158
    %v1234 = vpop.f32.mrb[0].mxu0
    %v1235 = vadd.f32 0.0, %v1234
    %v1236 = vpop.f32.mrb[0].mxu0
    %v1237 = vadd.f32 0.0, %v1236
    %v1238 = vpop.f32.mrb[0].mxu0
    %v1239 = vpop.f32.mrb[0].mxu0
    %1240 = vdwg.mxu0
    %v1241 = vadd.f32 %v1154, %v1194
    %v1242 = vadd.f32 %v1155, %v1196
    %v1243 = vadd.f32 %v1156, %v1235
    %v1244 = vadd.f32 %v1157, %v1237
    %v1245 = vtanh.pop %v1241
    %v1246 = vtanh.pop %v1242
    %v1247 = vtanh.pop %v1243
    %v1248 = vtanh.pop %v1244
    %v1249 = vmul.f32 %v1245, 0.5
    %v1250 = vadd.f32 %v1249, 0.5
    %v1251 = vmul.f32 %v1246, 0.5
    %v1252 = vadd.f32 %v1251, 0.5
    %v1253 = vmul.f32 %v1248, 0.5
    %v1254 = vadd.f32 %v1253, 0.5
    %v1255 = vmul.f32 %v1252, %v1151
    %v1256 = vmul.f32 %v1250, %v1247
    %v1257 = vadd.f32 %v1255, %v1256
    %v1258 = vtanh.pop %v1257
    %v1259 = vmul.f32 %v1254, %v1258
    %v1260 = vld [vmem:[#allocation4 + $0xe0] sm:$0xff]
    %v1261 = vld [vmem:[#allocation4 + $0xe8] sm:$0xff]
    %v1262 = vld [vmem:[#allocation4 + $0xf0] sm:$0xff]
    %v1263 = vld [vmem:[#allocation4 + $0xf8] sm:$0xff]
    %v1264 = vpack.c.bf16 %v1259, %v1259
    %1265 = vmatprep.subr.bf16.mxu0 %v460
    %1266 = vmatpush1.bf16.msra.mxu0 %v459
    %1267 = vmatprep.subr.bf16.mxu0 %v464
    %1268 = vmatpush1.bf16.msra.mxu0 %v463
    %1269 = vmatprep.subr.bf16.mxu0 %v468
    %1270 = vmatpush1.bf16.msra.mxu0 %v467
    %1271 = vmatprep.subr.bf16.mxu0 %v472
    %1272 = vmatpush1.bf16.msra.mxu0 %v471
    %1273 = vmatprep.subr.bf16.mxu0 %v476
    %1274 = vmatpush1.bf16.msra.mxu0 %v475
    %1275 = vmatprep.subr.bf16.mxu0 %v480
    %1276 = vmatpush1.bf16.msra.mxu0 %v479
    %1277 = vmatprep.subr.bf16.mxu0 %v484
    %1278 = vmatpush1.bf16.msra.mxu0 %v483
    %1279 = vmatprep.subr.bf16.mxu0 %v488
    %1280 = vmatpush1.bf16.msra.mxu0 %v487
    %1281 = vmatprep.subr.bf16.mxu0 0
    %1282 = vmatpush1.bf16.msra.mxu0 0
    %1283 = vmatprep.subr.bf16.mxu0 0
    %1284 = vmatpush1.bf16.msra.mxu0 0
    %1285 = vmatprep.subr.bf16.mxu0 0
    %1286 = vmatpush1.bf16.msra.mxu0 0
    %1287 = vmatprep.subr.bf16.mxu0 0
    %1288 = vmatpush1.bf16.msra.mxu0 0
    %1289 = vmatprep.subr.bf16.mxu0 0
    %1290 = vmatpush1.bf16.msra.mxu0 0
    %1291 = vmatprep.subr.bf16.mxu0 0
    %1292 = vmatpush1.bf16.msra.mxu0 0
    %1293 = vmatprep.subr.bf16.mxu0 0
    %1294 = vmatpush1.bf16.msra.mxu0 0
    %1295 = vmatprep.subr.bf16.mxu0 0
    %1296 = vmatpush1.bf16.msra.mxu0 0
    %1297 = vmatprep.mubr.bf16.mxu0 0
    %1298 = vmatmul.mubr.bf16.gmra.mrb[0].mxu0 %v1264
    %v1299 = vpop.f32.mrb[0].mxu0
    %v1300 = vadd.f32 0.0, %v1299
    %v1301 = vpop.f32.mrb[0].mxu0
    %v1302 = vadd.f32 0.0, %v1301
    %v1303 = vpop.f32.mrb[0].mxu0
    %v1304 = vpop.f32.mrb[0].mxu0
    %1305 = vdwg.mxu0
    %1306 = vmatprep.subr.bf16.mxu0 %v462
    %1307 = vmatpush1.bf16.msra.mxu0 %v461
    %1308 = vmatprep.subr.bf16.mxu0 %v466
    %1309 = vmatpush1.bf16.msra.mxu0 %v465
    %1310 = vmatprep.subr.bf16.mxu0 %v470
    %1311 = vmatpush1.bf16.msra.mxu0 %v469
    %1312 = vmatprep.subr.bf16.mxu0 %v474
    %1313 = vmatpush1.bf16.msra.mxu0 %v473
    %1314 = vmatprep.subr.bf16.mxu0 %v478
    %1315 = vmatpush1.bf16.msra.mxu0 %v477
    %1316 = vmatprep.subr.bf16.mxu0 %v482
    %1317 = vmatpush1.bf16.msra.mxu0 %v481
    %1318 = vmatprep.subr.bf16.mxu0 %v486
    %1319 = vmatpush1.bf16.msra.mxu0 %v485
    %1320 = vmatprep.subr.bf16.mxu0 %v490
    %1321 = vmatpush1.bf16.msra.mxu0 %v489
    %1322 = vmatprep.subr.bf16.mxu0 0
    %1323 = vmatpush1.bf16.msra.mxu0 0
    %1324 = vmatprep.subr.bf16.mxu0 0
    %1325 = vmatpush1.bf16.msra.mxu0 0
    %1326 = vmatprep.subr.bf16.mxu0 0
    %1327 = vmatpush1.bf16.msra.mxu0 0
    %1328 = vmatprep.subr.bf16.mxu0 0
    %1329 = vmatpush1.bf16.msra.mxu0 0
    %1330 = vmatprep.subr.bf16.mxu0 0
    %1331 = vmatpush1.bf16.msra.mxu0 0
    %1332 = vmatprep.subr.bf16.mxu0 0
    %1333 = vmatpush1.bf16.msra.mxu0 0
    %1334 = vmatprep.subr.bf16.mxu0 0
    %1335 = vmatpush1.bf16.msra.mxu0 0
    %1336 = vmatprep.subr.bf16.mxu0 0
    %1337 = vmatpush1.bf16.msra.mxu0 0
    %1338 = vmatprep.mubr.bf16.mxu0 0
    %1339 = vmatmul.mubr.bf16.gmra.mrb[0].mxu0 %v1264
    %v1340 = vpop.f32.mrb[0].mxu0
    %v1341 = vadd.f32 0.0, %v1340
    %v1342 = vpop.f32.mrb[0].mxu0
    %v1343 = vadd.f32 0.0, %v1342
    %v1344 = vpop.f32.mrb[0].mxu0
    %v1345 = vpop.f32.mrb[0].mxu0
    %1346 = vdwg.mxu0
    %v1347 = vadd.f32 %v1260, %v1300
    %v1348 = vadd.f32 %v1261, %v1302
    %v1349 = vadd.f32 %v1262, %v1341
    %v1350 = vadd.f32 %v1263, %v1343
    %v1351 = vtanh.pop %v1347
    %v1352 = vtanh.pop %v1348
    %v1353 = vtanh.pop %v1349
    %v1354 = vtanh.pop %v1350
    %v1355 = vmul.f32 %v1351, 0.5
    %v1356 = vadd.f32 %v1355, 0.5
    %v1357 = vmul.f32 %v1352, 0.5
    %v1358 = vadd.f32 %v1357, 0.5
    %v1359 = vmul.f32 %v1354, 0.5
    %v1360 = vadd.f32 %v1359, 0.5
    %v1361 = vmul.f32 %v1358, %v1257
    %v1362 = vmul.f32 %v1356, %v1353
    %v1363 = vadd.f32 %v1361, %v1362
    %v1364 = vtanh.pop %v1363
    %v1365 = vmul.f32 %v1360, %v1364
    %1366 = vst [vmem:[#allocation2] sm:$0xff] %v1365
    %1367 = vst [vmem:[#allocation3] sm:$0xff] %v1363
    // Predicated region
    $region38: #{tpu_custom_call.1} parent=1 // pred_check
      %p1368 = pneg %p53
    $region39: #{tpu_custom_call.1} parent=1 // pred_check_branch
      %1370 = sbr.rel (%p1368) target = $region41
    $region40: #{tpu_custom_call.1} parent=1 // pred_region
      %v1371 = vpack.c.bf16 %v1365, %v1365
      %v1372 = vld [vmem:[#allocation8] sm:$0xf]
      %v1373 = vld [vmem:[#allocation8 + $0x4] sm:$0xf]
      %v1374 = vld [vmem:[#allocation8 + $0x8] sm:$0xf]
      %v1375 = vld [vmem:[#allocation8 + $0xc] sm:$0xf]
      %v1376 = vld [vmem:[#allocation8 + $0x10] sm:$0xf]
      %v1377 = vld [vmem:[#allocation8 + $0x14] sm:$0xf]
      %v1378 = vld [vmem:[#allocation8 + $0x18] sm:$0xf]
      %v1379 = vld [vmem:[#allocation8 + $0x1c] sm:$0xf]
      %v1380 = vld [vmem:[#allocation8 + $0x20] sm:$0xf]
      %v1381 = vld [vmem:[#allocation8 + $0x24] sm:$0xf]
      %v1382 = vld [vmem:[#allocation8 + $0x28] sm:$0xf]
      %v1383 = vld [vmem:[#allocation8 + $0x2c] sm:$0xf]
      %v1384 = vld [vmem:[#allocation8 + $0x30] sm:$0xf]
      %v1385 = vld [vmem:[#allocation8 + $0x34] sm:$0xf]
      %v1386 = vld [vmem:[#allocation8 + $0x38] sm:$0xf]
      %v1387 = vld [vmem:[#allocation8 + $0x3c] sm:$0xf]
      %v1388 = vld [vmem:[%s5] sm:$0x1]
      %v1390 = vlaneseq
      %v1391 = vshrl.u32 %v1390, 7
      %v1392 = vsub.s32 0, %v1391
      %v1393 = vrot.slane %v1388, %v1392
      %v1411 = vunpack.c.l.b16 %v1372
      %v1412 = vunpack.c.l.b16 %v1373
      %v1413 = vunpack.c.l.b16 %v1374
      %v1414 = vunpack.c.l.b16 %v1375
      %v1415 = vunpack.c.l.b16 %v1376
      %v1416 = vunpack.c.l.b16 %v1377
      %v1417 = vunpack.c.l.b16 %v1378
      %v1418 = vunpack.c.l.b16 %v1379
      %v1419 = vunpack.c.l.b16 %v1380
      %v1420 = vunpack.c.l.b16 %v1381
      %v1421 = vunpack.c.l.b16 %v1382
      %v1422 = vunpack.c.l.b16 %v1383
      %v1423 = vunpack.c.l.b16 %v1384
      %v1424 = vunpack.c.l.b16 %v1385
      %v1425 = vunpack.c.l.b16 %v1386
      %v1426 = vunpack.c.l.b16 %v1387
      %v1427 = vpack.c.b16 %v1412, %v1411
      %v1428 = vpack.c.b16 %v1414, %v1413
      %v1429 = vpack.c.b16 %v1416, %v1415
      %v1430 = vpack.c.b16 %v1418, %v1417
      %v1431 = vpack.c.b16 %v1420, %v1419
      %v1432 = vpack.c.b16 %v1422, %v1421
      %v1433 = vpack.c.b16 %v1424, %v1423
      %v1434 = vpack.c.b16 %v1426, %v1425
      %1443 = vmatprep.subr.bf16.mxu0 0
      %1444 = vmatpush1.bf16.msra.mxu0 %v1427
      %1445 = vmatprep.subr.bf16.mxu0 0
      %1446 = vmatpush1.bf16.msra.mxu0 %v1428
      %1447 = vmatprep.subr.bf16.mxu0 0
      %1448 = vmatpush1.bf16.msra.mxu0 %v1429
      %1449 = vmatprep.subr.bf16.mxu0 0
      %1450 = vmatpush1.bf16.msra.mxu0 %v1430
      %1451 = vmatprep.subr.bf16.mxu0 0
      %1452 = vmatpush1.bf16.msra.mxu0 %v1431
      %1453 = vmatprep.subr.bf16.mxu0 0
      %1454 = vmatpush1.bf16.msra.mxu0 %v1432
      %1455 = vmatprep.subr.bf16.mxu0 0
      %1456 = vmatpush1.bf16.msra.mxu0 %v1433
      %1457 = vmatprep.subr.bf16.mxu0 0
      %1458 = vmatpush1.bf16.msra.mxu0 %v1434
      %1459 = vmatprep.subr.bf16.mxu0 0
      %1460 = vmatpush1.bf16.msra.mxu0 0
      %1461 = vmatprep.subr.bf16.mxu0 0
      %1462 = vmatpush1.bf16.msra.mxu0 0
      %1463 = vmatprep.subr.bf16.mxu0 0
      %1464 = vmatpush1.bf16.msra.mxu0 0
      %1465 = vmatprep.subr.bf16.mxu0 0
      %1466 = vmatpush1.bf16.msra.mxu0 0
      %1467 = vmatprep.subr.bf16.mxu0 0
      %1468 = vmatpush1.bf16.msra.mxu0 0
      %1469 = vmatprep.subr.bf16.mxu0 0
      %1470 = vmatpush1.bf16.msra.mxu0 0
      %1471 = vmatprep.subr.bf16.mxu0 0
      %1472 = vmatpush1.bf16.msra.mxu0 0
      %1473 = vmatprep.subr.bf16.mxu0 0
      %1474 = vmatpush1.bf16.msra.mxu0 0
      %1475 = vmatprep.mubr.bf16.mxu0 0
      %1476 = vmatmul.mubr.bf16.gmra.mrb[0].mxu0 %v1371
      %v1477 = vpop.f32.mrb[0].mxu0
      %v1478 = vadd.f32 %v1393, %v1477
      %v1479 = vpop.f32.mrb[0].mxu0
      %v1480 = vpop.f32.mrb[0].mxu0
      %v1481 = vpop.f32.mrb[0].mxu0
      %1482 = vdwg.mxu0
      %1483 = vst [vmem:[#allocation10] sm:$0xff] %v1478
    $region41: #{tpu_custom_call.1} parent=1 // pred_fallthru
      _
    // Predicated region
    $region42: #{tpu_custom_call.1} parent=1 // pred_check
      _
    $region43: #{tpu_custom_call.1} parent=1 // pred_check_branch
      %1485 = sbr.rel (0) target = $region45
    $region44: #{tpu_custom_call.1} parent=1 // pred_region
      %s1487 = ssub.s32 128, 128
      %1488 = vsyncadd [#allocation7], %s1487
      %s1490 = sshll.u32 [#allocation10], 4
      %s1491 = int_to_ptr.vmem [resolvable:$true] %s1490
      %1493 = dma.vmem_to_hbm [thread:$0]  %s1491, 128, %s6, [#allocation7]
    $region45: #{tpu_custom_call.1} parent=1 // pred_fallthru
      _
    // Predicated region
    $region46: #{tpu_custom_call.1} parent=1 // pred_check
      _
    $region47: #{tpu_custom_call.1} parent=1 // pred_check_branch
      %1495 = sbr.rel (0) target = $region49
    $region48: #{tpu_custom_call.1} parent=1 // pred_region
      %1496 = dma.done [#allocation7], 128
    $region49: #{tpu_custom_call.1} parent=1 // pred_fallthru
      _
    %1497 = vsyncpa [#allocation6], 1
    %1498 = vsyncpa [#allocation9], 1
    %1499 = vsyncpa [#allocation7], 1

</llo_original>
